<compile_context>
chip_gen: v7x
topology: tpu7x:2x2x1
jax: 0.10.0
libtpu: 0.0.40
codegen_flags: <defaults>
</compile_context>

<pallas_src>
import math
import jax
import jax.numpy as jnp
from jax import lax
from jax.experimental import pallas as pl
from jax.experimental.pallas import tpu as pltpu

NEG = -1000000000.0  # matches the PyTorch masked_fill constant


# ----------------------------- Pallas kernel (hot path) -----------------------------
def head_kernel(seq_ref, pooled_ref, mask_ref,
                convw_ref, convb_ref,
                l0w_ref, l0b_ref, l1w_ref, l1b_ref, l4w_ref, l4b_ref,
                cw_ref, cb_ref, out_ref):
    f32 = jnp.float32
    bf16 = jnp.bfloat16
    Bb, S, H = seq_ref.shape
    L = out_ref.shape[-1]
    inv_sqrt_d = 1.0 / math.sqrt(H)

    seq3 = seq_ref[...]                        # [Bb, S, H] bf16 (MXU input)
    pooled = pooled_ref[...].reshape(Bb, H)    # [Bb, H]    bf16
    masks = mask_ref[...]                      # [Bb, 3, S] f32, lane-dense in S
    amask = masks[:, 0:1, :]                   # [Bb, 1, S] attention mask

    def attend(q, kv):
        # q: [Bb, Q, H] bf16, kv: [Bb, S, H] bf16 -> context [Bb, Q, H] f32.
        # Score matmul keeps the big [S, H] operand as the untransposed LHS so only
        # the tiny [Q, H] query gets transposed; the [S, Q] scores are then flipped
        # (cheap) so the softmax reduces over lanes and the context matmul is in
        # canonical [m,k] x [k,n] form (no transpose of kv anywhere).
        st = jnp.einsum('bsh,bqh->bsq', kv, q, preferred_element_type=f32)
        s = jnp.transpose(st, (0, 2, 1)) * inv_sqrt_d          # [Bb, Q, S]
        s = jnp.where(amask == 0.0, NEG, s)
        m = jnp.max(s, axis=-1, keepdims=True)
        p = jnp.exp(s - m)
        p = p * pl.reciprocal(jnp.sum(p, axis=-1, keepdims=True), approx=False)
        return jnp.einsum('bqs,bsh->bqh', p.astype(bf16), kv,
                          preferred_element_type=f32)

    # ---- pool(h, mask.eq(0), 'max'): masked max over S, computed in f32 ----
    # Derive the [S, 1]-broadcast subj/obj masks in-kernel from the lane-dense input.
    so_t = jnp.transpose(masks[:, 1:3, :], (0, 2, 1))          # [Bb, S, 2]
    seqf = seq3.astype(f32)
    subj_out = jnp.max(jnp.where(so_t[:, :, 0:1] == 0.0, NEG, seqf), axis=1)  # [Bb, H]
    obj_out = jnp.max(jnp.where(so_t[:, :, 1:2] == 0.0, NEG, seqf), axis=1)   # [Bb, H]
    subj_b = subj_out.astype(bf16)
    obj_b = obj_out.astype(bf16)

    # ---- conv_2 / conv_3: per-tap dots against static slices of the [H, 5H] weight,
    # accumulated tap-by-tap so at most ~2 f32 [Bb*S, H] temps are live; each tap is
    # immediately fused with roll + edge mask + bias + relu + bf16 cast.
    # NOTE: pltpu.roll wraps across batch boundaries of the flattened Bb*S axis; the
    # rmod edge masks below zero exactly those wrapped rows (keep them tied together).
    # TODO(synk): if VMEM is still tight on 64 MiB parts at very large H, add a second
    # ("arbitrary") grid axis over the 5 conv taps instead of keeping [H,5H] resident.
    seq_flat = seq3.reshape(Bb * S, H)
    rmod = lax.broadcasted_iota(jnp.int32, (Bb * S, 1), 0) % S
    not_last = rmod < S - 1
    b2 = convb_ref[:, 0:H]
    b3 = convb_ref[:, H:2 * H]

    # conv_2: Conv1d(H, H, k=2, pad=0) -> relu -> zero row appended at t = S-1
    acc2 = jnp.dot(seq_flat, convw_ref[:, 0:H], preferred_element_type=f32) + b2
    a21 = jnp.dot(seq_flat, convw_ref[:, H:2 * H], preferred_element_type=f32)
    acc2 = acc2 + pltpu.roll(a21, shift=Bb * S - 1, axis=0)     # += W2_1 @ x[t+1]
    seg2_b = jnp.where(not_last, jnp.maximum(acc2, 0.0), 0.0).astype(bf16)
    seg2_b = seg2_b.reshape(Bb, S, H)

    # conv_3: Conv1d(H, H, k=3, pad=1) -> relu
    acc3 = jnp.dot(seq_flat, convw_ref[:, 3 * H:4 * H], preferred_element_type=f32) + b3
    a30 = jnp.dot(seq_flat, convw_ref[:, 2 * H:3 * H], preferred_element_type=f32)
    acc3 = acc3 + jnp.where(rmod >= 1, pltpu.roll(a30, shift=1, axis=0), 0.0)          # x[t-1]
    a32 = jnp.dot(seq_flat, convw_ref[:, 4 * H:5 * H], preferred_element_type=f32)
    acc3 = acc3 + jnp.where(not_last, pltpu.roll(a32, shift=Bb * S - 1, axis=0), 0.0)  # x[t+1]
    seg3_b = jnp.maximum(acc3, 0.0).astype(bf16).reshape(Bb, S, H)

    # ---- query_ent = l0([subj, obj, pooled]) ----
    q_ent = (jnp.dot(jnp.concatenate([subj_b, obj_b, pooled], axis=-1),
                     l0w_ref[...], preferred_element_type=f32) + l0b_ref[...])

    # ---- phase-1 attention: 4 queries vs the sequence, one batched softmax ----
    # row order: [query_ent -> global_out, pooled -> h0, subj -> h1, obj -> h2]
    q4 = jnp.concatenate([q_ent.astype(bf16)[:, None, :],
                          pooled[:, None, :],
                          subj_b[:, None, :],
                          obj_b[:, None, :]], axis=1)           # [Bb, 4, H]
    o1 = attend(q4, seq3)                                       # [Bb, 4, H] f32
    global_out = o1[:, 0, :]
    h0 = o1[:, 1, :]
    h1 = o1[:, 2, :]
    h2 = o1[:, 3, :]

    # ---- query_men = l1([h1, h2]) ----
    q_men = (jnp.dot(jnp.concatenate([h1, h2], axis=-1).astype(bf16),
                     l1w_ref[...], preferred_element_type=f32) + l1b_ref[...])
    q_men_b = q_men.astype(bf16)[:, None, :]                    # [Bb, 1, H]

    # ---- phase-2 attention: same query vs seq / seg2 / seg3, each KV used in place ----
    out_seg1 = attend(q_men_b, seq3)[:, 0, :]
    out_seg2 = attend(q_men_b, seg2_b)[:, 0, :]
    out_seg3 = attend(q_men_b, seg3_b)[:, 0, :]

    # ---- mix = relu(l4([pooled, global, h0, h1, h2, seg1, seg2, seg3])) -> classifier ----
    mix = jnp.concatenate([pooled,
                           global_out.astype(bf16), h0.astype(bf16),
                           h1.astype(bf16), h2.astype(bf16),
                           out_seg1.astype(bf16), out_seg2.astype(bf16),
                           out_seg3.astype(bf16)], axis=-1)     # [Bb, 8H] bf16
    hid = jnp.maximum(jnp.dot(mix, l4w_ref[...], preferred_element_type=f32)
                      + l4b_ref[...], 0.0)
    logits = (jnp.dot(hid.astype(bf16), cw_ref[...], preferred_element_type=f32)
              + cb_ref[...])                                    # [Bb, L] f32
    # size-1 middle axis kept so the output block's last two dims equal the full
    # array dims ((8,128) rule); the masked store on L lanes is negligible.
    out_ref[...] = logits.reshape(Bb, 1, L)


def relation_head(seq, pooled, attention_mask, subj_mask, obj_mask, p, block_b=None):
    """seq: [B,S,H], pooled: [B,H], masks: [B,S] int -> logits [B, L]."""
    B, S, H = seq.shape
    L = p["cls_w"].shape[1]
    bf16 = jnp.bfloat16

    # fused conv taps [H, 5H] (bf16) and fused conv bias [1, 2H] (f32)
    conv_w = jnp.concatenate([p["conv2_w"][0], p["conv2_w"][1],
                              p["conv3_w"][0], p["conv3_w"][1],
                              p["conv3_w"][2]], axis=1).astype(bf16)
    conv_b = jnp.concatenate([p["conv2_b"], p["conv3_b"]], axis=1)
    weights = (conv_w, conv_b,
               p["l0_w"].astype(bf16), p["l0_b"],
               p["l1_w"].astype(bf16), p["l1_b"],
               p["l4_w"].astype(bf16), p["l4_b"],
               p["cls_w"].astype(bf16), p["cls_b"])
    weight_bytes = sum(int(w.size) * w.dtype.itemsize for w in weights)

    # ---- generation-aware VMEM budget ----
    try:
        vmem_cap = int(getattr(pltpu.get_tpu_info(), "vmem_capacity_bytes", 128 << 20))
    except Exception:  # no query path available -> assume 128 MiB parts
        vmem_cap = 128 << 20

    def est(bb):
        lane = 128
        Sp, Hp, Lp = max(S, lane), max(H, lane), max(L, lane)
        blocks = 2 * (bb * S * Hp * 2        # sequence block (bf16, double-buffered)
                      + bb * Hp * 2          # pooled
                      + bb * 3 * Sp * 4      # packed masks (lane-dense)
                      + bb * Lp * 4)         # logits
        temps = (3 * bb * S * Hp * 4         # live f32 conv accumulators / pooling copy
                 + 2 * bb * S * Hp * 2       # bf16 seg2 / seg3
                 + 2 * bb * S * lane * 4     # broadcast subj/obj keep masks
                 + bb * 8 * Sp * 4           # attention scores
                 + bb * 24 * Hp * 4)         # small per-batch vectors
        return weight_bytes + blocks + temps

    budget = int(vmem_cap * 0.55)            # leave headroom for Mosaic internal scratch
    if block_b is None:
        fits = [d for d in range(B, 0, -1) if B % d == 0 and est(d) <= budget]
        if not fits:
            fits = [1]
        # Prefer >=2 grid steps so multi-TensorCore parts (v7x) shard the parallel
        # axis, unless that leaves the dominant conv matmul badly row-underfilled
        # while a single-step block would not be.
        multi = [d for d in fits if B // d >= 2]
        if multi and (multi[0] * S >= 256 or fits[0] * S < 256):
            block_b = multi[0]
        else:
            block_b = fits[0]
    Bb = block_b
    assert B % Bb == 0

    vmem_limit = int(min(vmem_cap - (8 << 20),
                         max(int(est(Bb) * 1.4) + (4 << 20), 32 << 20)))

    # activations in bf16 (MXU native input); masks packed lane-dense [B, 3, S] f32
    seq_b = seq.astype(bf16)
    pooled_b = pooled.astype(bf16).reshape(B, 1, H)
    masks = jnp.stack([attention_mask, subj_mask, obj_mask], axis=1).astype(jnp.float32)

    in_specs = [
        pl.BlockSpec((Bb, S, H), lambda g: (g, 0, 0)),   # sequence_output (bf16)
        pl.BlockSpec((Bb, 1, H), lambda g: (g, 0, 0)),   # pooled_output (bf16)
        pl.BlockSpec((Bb, 3, S), lambda g: (g, 0, 0)),   # attention/subj/obj masks
    ] + [
        # constant-index weights: single-buffered (no pipelining benefit, halves VMEM)
        pl.BlockSpec(w.shape, lambda g: (0, 0), pipeline_mode=pl.Buffered(1))
        for w in weights
    ]

    out = pl.pallas_call(
        head_kernel,
        out_shape=jax.ShapeDtypeStruct((B, 1, L), jnp.float32),
        grid_spec=pltpu.PrefetchScalarGridSpec(
            num_scalar_prefetch=0,
            grid=(B // Bb,),
            in_specs=in_specs,
            out_specs=pl.BlockSpec((Bb, 1, L), lambda g: (g, 0, 0)),
        ),
        compiler_params=pltpu.CompilerParams(
            dimension_semantics=("parallel",),
            vmem_limit_bytes=vmem_limit),
    )(seq_b, pooled_b, masks, *weights)
    return out.reshape(B, L)


# ----------------------------- tiny BERT-like encoder (plain JAX glue) -----------------------------
def _layer_norm(x, g, b, eps=1e-12):
    m = x.mean(-1, keepdims=True)
    v = ((x - m) ** 2).mean(-1, keepdims=True)
    return (x - m) / jnp.sqrt(v + eps) * g + b


def tiny_encoder(p, input_ids, attention_mask, token_type_ids):
    B, S = input_ids.shape
    x = (p["word_emb"][input_ids] + p["pos_emb"][None, :S, :] + p["type_emb"][token_type_ids])
    x = _layer_norm(x, p["ln0_g"], p["ln0_b"])
    H = x.shape[-1]
    q, k, v = x @ p["wq"], x @ p["wk"], x @ p["wv"]
    scores = (q @ jnp.swapaxes(k, -1, -2)) / math.sqrt(H)
    scores = jnp.where(attention_mask[:, None, :] == 0, -1e9, scores)
    attn = jax.nn.softmax(scores, axis=-1) @ v
    x = _layer_norm(x + attn @ p["wo"], p["ln1_g"], p["ln1_b"])
    ff = jax.nn.gelu(x @ p["wi"]) @ p["wf"]
    x = _layer_norm(x + ff, p["ln2_g"], p["ln2_b"])
    pooled = jnp.tanh(x[:, 0, :] @ p["pool_w"] + p["pool_b"])
    return x, pooled  # sequence_output [B,S,H], pooled_output [B,H]


# ----------------------------- deterministic parameter init -----------------------------
def init_params(key, vocab, S, H, L):
    ks = jax.random.split(key, 32)
    n = lambda i, shape, s=0.02: (jax.random.normal(ks[i], shape, jnp.float32) * s)
    p = {
        # encoder
        "word_emb": n(0, (vocab, H)), "pos_emb": n(1, (S, H)), "type_emb": n(2, (2, H)),
        "ln0_g": jnp.ones((H,), jnp.float32), "ln0_b": jnp.zeros((H,), jnp.float32),
        "wq": n(3, (H, H)), "wk": n(4, (H, H)), "wv": n(5, (H, H)), "wo": n(6, (H, H)),
        "ln1_g": jnp.ones((H,), jnp.float32), "ln1_b": jnp.zeros((H,), jnp.float32),
        "wi": n(7, (H, 4 * H)), "wf": n(8, (4 * H, H)),
        "ln2_g": jnp.ones((H,), jnp.float32), "ln2_b": jnp.zeros((H,), jnp.float32),
        "pool_w": n(9, (H, H)), "pool_b": jnp.zeros((H,), jnp.float32),
        # head.  Conv taps stored as [K, H_in, H_out] (PyTorch W[:, :, k].T);
        # linear weights stored transposed as [in, out] so the kernel does x @ W.
        "conv2_w": n(10, (2, H, H), 0.1), "conv2_b": n(11, (1, H), 0.1),
        "conv3_w": n(12, (3, H, H), 0.1), "conv3_b": n(13, (1, H), 0.1),
        "l0_w": n(14, (3 * H, H), 0.1), "l0_b": n(15, (1, H), 0.1),
        "l1_w": n(16, (2 * H, H), 0.1), "l1_b": n(17, (1, H), 0.1),
        "l4_w": n(18, (8 * H, H), 0.1), "l4_b": n(19, (1, H), 0.1),
        "cls_w": n(20, (H, L), 0.1), "cls_b": n(21, (1, L), 0.1),
    }
    return p


def forward(p, input_ids, attention_mask, token_type_ids, subj_mask, obj_mask):
    sequence_output, pooled_output = tiny_encoder(p, input_ids, attention_mask, token_type_ids)
    logits = relation_head(sequence_output, pooled_output,
                           attention_mask, subj_mask, obj_mask, p)
    return logits


if __name__ == "__main__":
    B, S, H, L, VOCAB = 2, 8, 32, 4, 64
    key = jax.random.PRNGKey(0)
    kp, kid = jax.random.split(key)
    params = init_params(kp, VOCAB, S, H, L)

    input_ids = jax.random.randint(kid, (B, S), 0, VOCAB, dtype=jnp.int32)
    token_type_ids = jnp.zeros((B, S), dtype=jnp.int32)
    attention_mask = jnp.array([[1, 1, 1, 1, 1, 1, 1, 1],
                                [1, 1, 1, 1, 1, 1, 0, 0]], dtype=jnp.int32)
    subj_mask = jnp.array([[0, 1, 1, 0, 0, 0, 0, 0],
                           [0, 0, 1, 1, 0, 0, 0, 0]], dtype=jnp.int32)
    obj_mask = jnp.array([[0, 0, 0, 0, 1, 1, 0, 0],
                          [0, 0, 0, 0, 1, 0, 0, 0]], dtype=jnp.int32)

    logits = forward(params, input_ids, attention_mask, token_type_ids, subj_mask, obj_mask)
    logits = jax.block_until_ready(logits)
    assert logits.shape == (B, L) and bool(jnp.all(jnp.isfinite(logits)))
    print("KERNEL_OK")
</pallas_src>

<mosaic_0001>
module attributes {stable_mosaic.version = 11 : i64} {
  func.func @head_kernel(%arg0: i32, %arg1: memref<1x8x32xbf16, #tpu.memory_space<vmem>>, %arg2: memref<1x1x32xbf16, #tpu.memory_space<vmem>>, %arg3: memref<1x3x8xf32, #tpu.memory_space<vmem>>, %arg4: memref<32x160xbf16, #tpu.memory_space<vmem>>, %arg5: memref<1x64xf32, #tpu.memory_space<vmem>>, %arg6: memref<96x32xbf16, #tpu.memory_space<vmem>>, %arg7: memref<1x32xf32, #tpu.memory_space<vmem>>, %arg8: memref<64x32xbf16, #tpu.memory_space<vmem>>, %arg9: memref<1x32xf32, #tpu.memory_space<vmem>>, %arg10: memref<256x32xbf16, #tpu.memory_space<vmem>>, %arg11: memref<1x32xf32, #tpu.memory_space<vmem>>, %arg12: memref<32x4xbf16, #tpu.memory_space<vmem>>, %arg13: memref<1x4xf32, #tpu.memory_space<vmem>>, %arg14: memref<1x1x4xf32, #tpu.memory_space<vmem>>) attributes {dimension_semantics = [#tpu.dimension_semantics<parallel>], iteration_bounds = array<i64: 2>, scalar_prefetch = 0 : i64, scratch_operands = 0 : i64, tpu.core_type = #tpu.core_type<tc>, window_params = [{transform_indices = @transform_0, window_bounds = array<i64: 1, 8, 32>}, {transform_indices = @transform_1, window_bounds = array<i64: 1, 1, 32>}, {transform_indices = @transform_2, window_bounds = array<i64: 1, 3, 8>}, {pipeline_mode = #tpu.pipeline_mode<synchronous>, transform_indices = @transform_3, window_bounds = array<i64: 32, 160>}, {pipeline_mode = #tpu.pipeline_mode<synchronous>, transform_indices = @transform_4, window_bounds = array<i64: 1, 64>}, {pipeline_mode = #tpu.pipeline_mode<synchronous>, transform_indices = @transform_5, window_bounds = array<i64: 96, 32>}, {pipeline_mode = #tpu.pipeline_mode<synchronous>, transform_indices = @transform_6, window_bounds = array<i64: 1, 32>}, {pipeline_mode = #tpu.pipeline_mode<synchronous>, transform_indices = @transform_7, window_bounds = array<i64: 64, 32>}, {pipeline_mode = #tpu.pipeline_mode<synchronous>, transform_indices = @transform_8, window_bounds = array<i64: 1, 32>}, {pipeline_mode = #tpu.pipeline_mode<synchronous>, transform_indices = @transform_9, window_bounds = array<i64: 256, 32>}, {pipeline_mode = #tpu.pipeline_mode<synchronous>, transform_indices = @transform_10, window_bounds = array<i64: 1, 32>}, {pipeline_mode = #tpu.pipeline_mode<synchronous>, transform_indices = @transform_11, window_bounds = array<i64: 32, 4>}, {pipeline_mode = #tpu.pipeline_mode<synchronous>, transform_indices = @transform_12, window_bounds = array<i64: 1, 4>}, {transform_indices = @transform_13, window_bounds = array<i64: 1, 1, 4>}]} {
    %c0 = arith.constant 0 : index
    %c0_0 = arith.constant 0 : index
    %c0_1 = arith.constant 0 : index
    %0 = vector.load %arg1[%c0, %c0_0, %c0_1] : memref<1x8x32xbf16, #tpu.memory_space<vmem>>, vector<1x8x32xbf16>
    %c0_2 = arith.constant 0 : index
    %c0_3 = arith.constant 0 : index
    %c0_4 = arith.constant 0 : index
    %1 = vector.load %arg2[%c0_2, %c0_3, %c0_4] : memref<1x1x32xbf16, #tpu.memory_space<vmem>>, vector<1x1x32xbf16>
    %2 = vector.shape_cast %1 : vector<1x1x32xbf16> to vector<1x32xbf16>
    %c0_5 = arith.constant 0 : index
    %c0_6 = arith.constant 0 : index
    %c0_7 = arith.constant 0 : index
    %3 = vector.load %arg3[%c0_5, %c0_6, %c0_7] : memref<1x3x8xf32, #tpu.memory_space<vmem>>, vector<1x3x8xf32>
    %4 = vector.extract_strided_slice %3 {offsets = [0, 0, 0], sizes = [1, 1, 8], strides = [1, 1, 1]} : vector<1x3x8xf32> to vector<1x1x8xf32>
    %5 = vector.extract_strided_slice %3 {offsets = [0, 1, 0], sizes = [1, 2, 8], strides = [1, 1, 1]} : vector<1x3x8xf32> to vector<1x2x8xf32>
    %6 = tpu.transpose %5, [0, 2, 1] : vector<1x2x8xf32> -> vector<1x8x2xf32>
    %7 = arith.extf %0 : vector<1x8x32xbf16> to vector<1x8x32xf32>
    %8 = vector.extract_strided_slice %6 {offsets = [0, 0, 0], sizes = [1, 8, 1], strides = [1, 1, 1]} : vector<1x8x2xf32> to vector<1x8x1xf32>
    %cst = arith.constant 0.000000e+00 : f32
    %9 = vector.broadcast %cst : f32 to vector<1x8x1xf32>
    %10 = arith.cmpf oeq, %8, %9 : vector<1x8x1xf32>
    %cst_8 = arith.constant -1.000000e+09 : f32
    %11 = vector.shape_cast %10 : vector<1x8x1xi1> to vector<1x8x1xi1>
    %12 = vector.broadcast %11 : vector<1x8x1xi1> to vector<1x8x32xi1>
    %13 = vector.broadcast %cst_8 : f32 to vector<1x8x32xf32>
    %14 = arith.select %12, %13, %7 : vector<1x8x32xi1>, vector<1x8x32xf32>
    %cst_9 = arith.constant dense<0xFF800000> : vector<1x32xf32>
    %15 = vector.multi_reduction <maximumf>, %14, %cst_9 [1] : vector<1x8x32xf32> to vector<1x32xf32>
    %16 = vector.extract_strided_slice %6 {offsets = [0, 0, 1], sizes = [1, 8, 1], strides = [1, 1, 1]} : vector<1x8x2xf32> to vector<1x8x1xf32>
    %cst_10 = arith.constant 0.000000e+00 : f32
    %17 = vector.broadcast %cst_10 : f32 to vector<1x8x1xf32>
    %18 = arith.cmpf oeq, %16, %17 : vector<1x8x1xf32>
    %cst_11 = arith.constant -1.000000e+09 : f32
    %19 = vector.shape_cast %18 : vector<1x8x1xi1> to vector<1x8x1xi1>
    %20 = vector.broadcast %19 : vector<1x8x1xi1> to vector<1x8x32xi1>
    %21 = vector.broadcast %cst_11 : f32 to vector<1x8x32xf32>
    %22 = arith.select %20, %21, %7 : vector<1x8x32xi1>, vector<1x8x32xf32>
    %cst_12 = arith.constant dense<0xFF800000> : vector<1x32xf32>
    %23 = vector.multi_reduction <maximumf>, %22, %cst_12 [1] : vector<1x8x32xf32> to vector<1x32xf32>
    %24 = arith.truncf %15 : vector<1x32xf32> to vector<1x32xbf16>
    %25 = arith.truncf %23 : vector<1x32xf32> to vector<1x32xbf16>
    %26 = vector.shape_cast %0 : vector<1x8x32xbf16> to vector<8x32xbf16>
    %27 = tpu.iota {dimensions = array<i32: 0>} : vector<8x1xi32>
    %c8_i32 = arith.constant 8 : i32
    %c0_i32 = arith.constant 0 : i32
    %28 = arith.cmpi eq, %c8_i32, %c0_i32 : i32
    %c1_i32 = arith.constant 1 : i32
    %29 = arith.select %28, %c1_i32, %c8_i32 : i32
    %30 = vector.broadcast %29 : i32 to vector<8x1xi32>
    %31 = arith.remsi %27, %30 : vector<8x1xi32>
    %c0_i32_13 = arith.constant 0 : i32
    %32 = vector.broadcast %c0_i32_13 : i32 to vector<8x1xi32>
    %33 = arith.cmpi ne, %31, %32 : vector<8x1xi32>
    %c0_i32_14 = arith.constant 0 : i32
    %34 = vector.broadcast %c0_i32_14 : i32 to vector<8x1xi32>
    %35 = arith.cmpi slt, %31, %34 : vector<8x1xi32>
    %c0_i32_15 = arith.constant 0 : i32
    %36 = arith.cmpi slt, %29, %c0_i32_15 : i32
    %37 = vector.broadcast %36 : i1 to vector<8x1xi1>
    %38 = vector.broadcast %37 : vector<8x1xi1> to vector<8x1xi1>
    %39 = arith.xori %35, %38 : vector<8x1xi1>
    %40 = arith.andi %39, %33 : vector<8x1xi1>
    %41 = vector.broadcast %29 : i32 to vector<8x1xi32>
    %42 = arith.addi %31, %41 : vector<8x1xi32>
    %43 = arith.select %40, %42, %31 : vector<8x1xi1>, vector<8x1xi32>
    %c7_i32 = arith.constant 7 : i32
    %44 = vector.broadcast %c7_i32 : i32 to vector<8x1xi32>
    %45 = arith.cmpi slt, %43, %44 : vector<8x1xi32>
    %c0_16 = arith.constant 0 : index
    %c0_17 = arith.constant 0 : index
    %46 = vector.load %arg5[%c0_16, %c0_17] : memref<1x64xf32, #tpu.memory_space<vmem>>, vector<1x32xf32>
    %c0_18 = arith.constant 0 : index
    %c32 = arith.constant 32 : index
    %47 = vector.load %arg5[%c0_18, %c32] : memref<1x64xf32, #tpu.memory_space<vmem>>, vector<1x32xf32>
    %c0_19 = arith.constant 0 : index
    %c0_20 = arith.constant 0 : index
    %48 = vector.load %arg4[%c0_19, %c0_20] : memref<32x160xbf16, #tpu.memory_space<vmem>>, vector<32x32xbf16>
    %cst_21 = arith.constant dense<0.000000e+00> : vector<8x32xf32>
    %49 = tpu.matmul %26, %48, %cst_21 {dimension_numbers = #tpu.dot_dimension_numbers<[1], [0], [0], [1], [0, 0, 1, 1], [], []>} : vector<8x32xbf16>, vector<32x32xbf16>, vector<8x32xf32> -> vector<8x32xf32>
    %50 = vector.broadcast %46 : vector<1x32xf32> to vector<8x32xf32>
    %51 = arith.addf %49, %50 : vector<8x32xf32>
    %c0_22 = arith.constant 0 : index
    %c32_23 = arith.constant 32 : index
    %52 = vector.load %arg4[%c0_22, %c32_23] : memref<32x160xbf16, #tpu.memory_space<vmem>>, vector<32x32xbf16>
    %cst_24 = arith.constant dense<0.000000e+00> : vector<8x32xf32>
    %53 = tpu.matmul %26, %52, %cst_24 {dimension_numbers = #tpu.dot_dimension_numbers<[1], [0], [0], [1], [0, 0, 1, 1], [], []>} : vector<8x32xbf16>, vector<32x32xbf16>, vector<8x32xf32> -> vector<8x32xf32>
    %c7_i32_25 = arith.constant 7 : i32
    %54 = tpu.dynamic_rotate %53 by %c7_i32_25 dim 0 : vector<8x32xf32>, i32 -> vector<8x32xf32>
    %55 = arith.addf %51, %54 : vector<8x32xf32>
    %cst_26 = arith.constant 0.000000e+00 : f32
    %56 = vector.broadcast %cst_26 : f32 to vector<8x32xf32>
    %57 = arith.maximumf %55, %56 : vector<8x32xf32>
    %cst_27 = arith.constant 0.000000e+00 : f32
    %58 = vector.shape_cast %45 : vector<8x1xi1> to vector<8x1xi1>
    %59 = vector.broadcast %58 : vector<8x1xi1> to vector<8x32xi1>
    %60 = vector.broadcast %cst_27 : f32 to vector<8x32xf32>
    %61 = arith.select %59, %57, %60 : vector<8x32xi1>, vector<8x32xf32>
    %62 = arith.truncf %61 : vector<8x32xf32> to vector<8x32xbf16>
    %63 = vector.shape_cast %62 : vector<8x32xbf16> to vector<1x8x32xbf16>
    %c0_28 = arith.constant 0 : index
    %c96 = arith.constant 96 : index
    %64 = vector.load %arg4[%c0_28, %c96] : memref<32x160xbf16, #tpu.memory_space<vmem>>, vector<32x32xbf16>
    %cst_29 = arith.constant dense<0.000000e+00> : vector<8x32xf32>
    %65 = tpu.matmul %26, %64, %cst_29 {dimension_numbers = #tpu.dot_dimension_numbers<[1], [0], [0], [1], [0, 0, 1, 1], [], []>} : vector<8x32xbf16>, vector<32x32xbf16>, vector<8x32xf32> -> vector<8x32xf32>
    %66 = vector.broadcast %47 : vector<1x32xf32> to vector<8x32xf32>
    %67 = arith.addf %65, %66 : vector<8x32xf32>
    %c0_30 = arith.constant 0 : index
    %c64 = arith.constant 64 : index
    %68 = vector.load %arg4[%c0_30, %c64] : memref<32x160xbf16, #tpu.memory_space<vmem>>, vector<32x32xbf16>
    %cst_31 = arith.constant dense<0.000000e+00> : vector<8x32xf32>
    %69 = tpu.matmul %26, %68, %cst_31 {dimension_numbers = #tpu.dot_dimension_numbers<[1], [0], [0], [1], [0, 0, 1, 1], [], []>} : vector<8x32xbf16>, vector<32x32xbf16>, vector<8x32xf32> -> vector<8x32xf32>
    %c1_i32_32 = arith.constant 1 : i32
    %70 = vector.broadcast %c1_i32_32 : i32 to vector<8x1xi32>
    %71 = arith.cmpi sge, %43, %70 : vector<8x1xi32>
    %c1_i32_33 = arith.constant 1 : i32
    %72 = tpu.dynamic_rotate %69 by %c1_i32_33 dim 0 : vector<8x32xf32>, i32 -> vector<8x32xf32>
    %cst_34 = arith.constant 0.000000e+00 : f32
    %73 = vector.shape_cast %71 : vector<8x1xi1> to vector<8x1xi1>
    %74 = vector.broadcast %73 : vector<8x1xi1> to vector<8x32xi1>
    %75 = vector.broadcast %cst_34 : f32 to vector<8x32xf32>
    %76 = arith.select %74, %72, %75 : vector<8x32xi1>, vector<8x32xf32>
    %77 = arith.addf %67, %76 : vector<8x32xf32>
    %c0_35 = arith.constant 0 : index
    %c128 = arith.constant 128 : index
    %78 = vector.load %arg4[%c0_35, %c128] : memref<32x160xbf16, #tpu.memory_space<vmem>>, vector<32x32xbf16>
    %cst_36 = arith.constant dense<0.000000e+00> : vector<8x32xf32>
    %79 = tpu.matmul %26, %78, %cst_36 {dimension_numbers = #tpu.dot_dimension_numbers<[1], [0], [0], [1], [0, 0, 1, 1], [], []>} : vector<8x32xbf16>, vector<32x32xbf16>, vector<8x32xf32> -> vector<8x32xf32>
    %c7_i32_37 = arith.constant 7 : i32
    %80 = tpu.dynamic_rotate %79 by %c7_i32_37 dim 0 : vector<8x32xf32>, i32 -> vector<8x32xf32>
    %cst_38 = arith.constant 0.000000e+00 : f32
    %81 = vector.shape_cast %45 : vector<8x1xi1> to vector<8x1xi1>
    %82 = vector.broadcast %81 : vector<8x1xi1> to vector<8x32xi1>
    %83 = vector.broadcast %cst_38 : f32 to vector<8x32xf32>
    %84 = arith.select %82, %80, %83 : vector<8x32xi1>, vector<8x32xf32>
    %85 = arith.addf %77, %84 : vector<8x32xf32>
    %cst_39 = arith.constant 0.000000e+00 : f32
    %86 = vector.broadcast %cst_39 : f32 to vector<8x32xf32>
    %87 = arith.maximumf %85, %86 : vector<8x32xf32>
    %88 = arith.truncf %87 : vector<8x32xf32> to vector<8x32xbf16>
    %89 = vector.shape_cast %88 : vector<8x32xbf16> to vector<1x8x32xbf16>
    %90 = tpu.concatenate %24, %25, %2 in 1 : vector<1x32xbf16>, vector<1x32xbf16>, vector<1x32xbf16> -> vector<1x96xbf16>
    %c0_40 = arith.constant 0 : index
    %c0_41 = arith.constant 0 : index
    %91 = vector.load %arg6[%c0_40, %c0_41] : memref<96x32xbf16, #tpu.memory_space<vmem>>, vector<96x32xbf16>
    %cst_42 = arith.constant dense<0.000000e+00> : vector<1x32xf32>
    %92 = tpu.matmul %90, %91, %cst_42 {dimension_numbers = #tpu.dot_dimension_numbers<[1], [0], [0], [1], [0, 0, 1, 1], [], []>} : vector<1x96xbf16>, vector<96x32xbf16>, vector<1x32xf32> -> vector<1x32xf32>
    %c0_43 = arith.constant 0 : index
    %c0_44 = arith.constant 0 : index
    %93 = vector.load %arg7[%c0_43, %c0_44] : memref<1x32xf32, #tpu.memory_space<vmem>>, vector<1x32xf32>
    %94 = arith.addf %92, %93 : vector<1x32xf32>
    %95 = arith.truncf %94 : vector<1x32xf32> to vector<1x32xbf16>
    %96 = vector.shape_cast %95 : vector<1x32xbf16> to vector<1x1x32xbf16>
    %97 = vector.shape_cast %2 : vector<1x32xbf16> to vector<1x1x32xbf16>
    %98 = vector.shape_cast %24 : vector<1x32xbf16> to vector<1x1x32xbf16>
    %99 = vector.shape_cast %25 : vector<1x32xbf16> to vector<1x1x32xbf16>
    %100 = tpu.concatenate %96, %97, %98, %99 in 1 : vector<1x1x32xbf16>, vector<1x1x32xbf16>, vector<1x1x32xbf16>, vector<1x1x32xbf16> -> vector<1x4x32xbf16>
    "tpu.trace_start"() <{level = 10 : i32, message = "bsh,bqh->bsq"}> : () -> ()
    %cst_45 = arith.constant dense<0.000000e+00> : vector<1x8x4xf32>
    %101 = tpu.matmul %0, %100, %cst_45 {dimension_numbers = #tpu.dot_dimension_numbers<[2], [2], [1], [1], [0, 0, 0, 1, 1, 1], [0], [0]>} : vector<1x8x32xbf16>, vector<1x4x32xbf16>, vector<1x8x4xf32> -> vector<1x8x4xf32>
    "tpu.trace_stop"() : () -> ()
    %102 = tpu.transpose %101, [0, 2, 1] : vector<1x8x4xf32> -> vector<1x4x8xf32>
    %cst_46 = arith.constant 0.176776692 : f32
    %103 = vector.broadcast %cst_46 : f32 to vector<1x4x8xf32>
    %104 = arith.mulf %102, %103 : vector<1x4x8xf32>
    %cst_47 = arith.constant 0.000000e+00 : f32
    %105 = vector.broadcast %cst_47 : f32 to vector<1x1x8xf32>
    %106 = arith.cmpf oeq, %4, %105 : vector<1x1x8xf32>
    %cst_48 = arith.constant -1.000000e+09 : f32
    %107 = vector.shape_cast %106 : vector<1x1x8xi1> to vector<1x1x8xi1>
    %108 = vector.broadcast %107 : vector<1x1x8xi1> to vector<1x4x8xi1>
    %109 = vector.broadcast %cst_48 : f32 to vector<1x4x8xf32>
    %110 = arith.select %108, %109, %104 : vector<1x4x8xi1>, vector<1x4x8xf32>
    %cst_49 = arith.constant dense<0xFF800000> : vector<1x4xf32>
    %111 = vector.multi_reduction <maximumf>, %110, %cst_49 [2] : vector<1x4x8xf32> to vector<1x4xf32>
    %112 = vector.shape_cast %111 : vector<1x4xf32> to vector<1x4x1xf32>
    %113 = vector.broadcast %112 : vector<1x4x1xf32> to vector<1x4x8xf32>
    %114 = arith.subf %110, %113 : vector<1x4x8xf32>
    %115 = math.exp %114 : vector<1x4x8xf32>
    %cst_50 = arith.constant dense<0.000000e+00> : vector<1x4xf32>
    %116 = vector.multi_reduction <add>, %115, %cst_50 [2] : vector<1x4x8xf32> to vector<1x4xf32>
    %117 = vector.shape_cast %116 : vector<1x4xf32> to vector<1x4x1xf32>
    %118 = tpu.reciprocal %117 : vector<1x4x1xf32> -> vector<1x4x1xf32>
    %119 = vector.broadcast %118 : vector<1x4x1xf32> to vector<1x4x8xf32>
    %120 = arith.mulf %115, %119 : vector<1x4x8xf32>
    %121 = arith.truncf %120 : vector<1x4x8xf32> to vector<1x4x8xbf16>
    "tpu.trace_start"() <{level = 10 : i32, message = "bqs,bsh->bqh"}> : () -> ()
    %cst_51 = arith.constant dense<0.000000e+00> : vector<1x4x32xf32>
    %122 = tpu.matmul %121, %0, %cst_51 {dimension_numbers = #tpu.dot_dimension_numbers<[2], [1], [1], [2], [0, 0, 0, 1, 1, 2], [0], [0]>} : vector<1x4x8xbf16>, vector<1x8x32xbf16>, vector<1x4x32xf32> -> vector<1x4x32xf32>
    "tpu.trace_stop"() : () -> ()
    %123 = vector.extract_strided_slice %122 {offsets = [0, 0, 0], sizes = [1, 1, 32], strides = [1, 1, 1]} : vector<1x4x32xf32> to vector<1x1x32xf32>
    %124 = vector.shape_cast %123 : vector<1x1x32xf32> to vector<1x32xf32>
    %125 = vector.extract_strided_slice %122 {offsets = [0, 1, 0], sizes = [1, 1, 32], strides = [1, 1, 1]} : vector<1x4x32xf32> to vector<1x1x32xf32>
    %126 = vector.shape_cast %125 : vector<1x1x32xf32> to vector<1x32xf32>
    %127 = vector.extract_strided_slice %122 {offsets = [0, 2, 0], sizes = [1, 1, 32], strides = [1, 1, 1]} : vector<1x4x32xf32> to vector<1x1x32xf32>
    %128 = vector.shape_cast %127 : vector<1x1x32xf32> to vector<1x32xf32>
    %129 = vector.extract_strided_slice %122 {offsets = [0, 3, 0], sizes = [1, 1, 32], strides = [1, 1, 1]} : vector<1x4x32xf32> to vector<1x1x32xf32>
    %130 = vector.shape_cast %129 : vector<1x1x32xf32> to vector<1x32xf32>
    %131 = tpu.concatenate %128, %130 in 1 : vector<1x32xf32>, vector<1x32xf32> -> vector<1x64xf32>
    %132 = arith.truncf %131 : vector<1x64xf32> to vector<1x64xbf16>
    %c0_52 = arith.constant 0 : index
    %c0_53 = arith.constant 0 : index
    %133 = vector.load %arg8[%c0_52, %c0_53] : memref<64x32xbf16, #tpu.memory_space<vmem>>, vector<64x32xbf16>
    %cst_54 = arith.constant dense<0.000000e+00> : vector<1x32xf32>
    %134 = tpu.matmul %132, %133, %cst_54 {dimension_numbers = #tpu.dot_dimension_numbers<[1], [0], [0], [1], [0, 0, 1, 1], [], []>} : vector<1x64xbf16>, vector<64x32xbf16>, vector<1x32xf32> -> vector<1x32xf32>
    %c0_55 = arith.constant 0 : index
    %c0_56 = arith.constant 0 : index
    %135 = vector.load %arg9[%c0_55, %c0_56] : memref<1x32xf32, #tpu.memory_space<vmem>>, vector<1x32xf32>
    %136 = arith.addf %134, %135 : vector<1x32xf32>
    %137 = arith.truncf %136 : vector<1x32xf32> to vector<1x32xbf16>
    %138 = vector.shape_cast %137 : vector<1x32xbf16> to vector<1x1x32xbf16>
    "tpu.trace_start"() <{level = 10 : i32, message = "bsh,bqh->bsq"}> : () -> ()
    %cst_57 = arith.constant dense<0.000000e+00> : vector<1x8x1xf32>
    %139 = tpu.matmul %0, %138, %cst_57 {dimension_numbers = #tpu.dot_dimension_numbers<[2], [2], [1], [1], [0, 0, 0, 1, 1, 1], [0], [0]>} : vector<1x8x32xbf16>, vector<1x1x32xbf16>, vector<1x8x1xf32> -> vector<1x8x1xf32>
    "tpu.trace_stop"() : () -> ()
    %140 = tpu.transpose %139, [0, 2, 1] : vector<1x8x1xf32> -> vector<1x1x8xf32>
    %cst_58 = arith.constant 0.176776692 : f32
    %141 = vector.broadcast %cst_58 : f32 to vector<1x1x8xf32>
    %142 = arith.mulf %140, %141 : vector<1x1x8xf32>
    %cst_59 = arith.constant 0.000000e+00 : f32
    %143 = vector.broadcast %cst_59 : f32 to vector<1x1x8xf32>
    %144 = arith.cmpf oeq, %4, %143 : vector<1x1x8xf32>
    %cst_60 = arith.constant -1.000000e+09 : f32
    %145 = vector.broadcast %cst_60 : f32 to vector<1x1x8xf32>
    %146 = arith.select %144, %145, %142 : vector<1x1x8xi1>, vector<1x1x8xf32>
    %cst_61 = arith.constant dense<0xFF800000> : vector<1x1xf32>
    %147 = vector.multi_reduction <maximumf>, %146, %cst_61 [2] : vector<1x1x8xf32> to vector<1x1xf32>
    %148 = vector.shape_cast %147 : vector<1x1xf32> to vector<1x1x1xf32>
    %149 = vector.broadcast %148 : vector<1x1x1xf32> to vector<1x1x8xf32>
    %150 = arith.subf %146, %149 : vector<1x1x8xf32>
    %151 = math.exp %150 : vector<1x1x8xf32>
    %cst_62 = arith.constant dense<0.000000e+00> : vector<1x1xf32>
    %152 = vector.multi_reduction <add>, %151, %cst_62 [2] : vector<1x1x8xf32> to vector<1x1xf32>
    %153 = vector.shape_cast %152 : vector<1x1xf32> to vector<1x1x1xf32>
    %154 = tpu.reciprocal %153 : vector<1x1x1xf32> -> vector<1x1x1xf32>
    %155 = vector.broadcast %154 : vector<1x1x1xf32> to vector<1x1x8xf32>
    %156 = arith.mulf %151, %155 : vector<1x1x8xf32>
    %157 = arith.truncf %156 : vector<1x1x8xf32> to vector<1x1x8xbf16>
    "tpu.trace_start"() <{level = 10 : i32, message = "bqs,bsh->bqh"}> : () -> ()
    %cst_63 = arith.constant dense<0.000000e+00> : vector<1x1x32xf32>
    %158 = tpu.matmul %157, %0, %cst_63 {dimension_numbers = #tpu.dot_dimension_numbers<[2], [1], [1], [2], [0, 0, 0, 1, 1, 2], [0], [0]>} : vector<1x1x8xbf16>, vector<1x8x32xbf16>, vector<1x1x32xf32> -> vector<1x1x32xf32>
    "tpu.trace_stop"() : () -> ()
    %159 = vector.shape_cast %158 : vector<1x1x32xf32> to vector<1x32xf32>
    "tpu.trace_start"() <{level = 10 : i32, message = "bsh,bqh->bsq"}> : () -> ()
    %cst_64 = arith.constant dense<0.000000e+00> : vector<1x8x1xf32>
    %160 = tpu.matmul %63, %138, %cst_64 {dimension_numbers = #tpu.dot_dimension_numbers<[2], [2], [1], [1], [0, 0, 0, 1, 1, 1], [0], [0]>} : vector<1x8x32xbf16>, vector<1x1x32xbf16>, vector<1x8x1xf32> -> vector<1x8x1xf32>
    "tpu.trace_stop"() : () -> ()
    %161 = tpu.transpose %160, [0, 2, 1] : vector<1x8x1xf32> -> vector<1x1x8xf32>
    %cst_65 = arith.constant 0.176776692 : f32
    %162 = vector.broadcast %cst_65 : f32 to vector<1x1x8xf32>
    %163 = arith.mulf %161, %162 : vector<1x1x8xf32>
    %cst_66 = arith.constant 0.000000e+00 : f32
    %164 = vector.broadcast %cst_66 : f32 to vector<1x1x8xf32>
    %165 = arith.cmpf oeq, %4, %164 : vector<1x1x8xf32>
    %cst_67 = arith.constant -1.000000e+09 : f32
    %166 = vector.broadcast %cst_67 : f32 to vector<1x1x8xf32>
    %167 = arith.select %165, %166, %163 : vector<1x1x8xi1>, vector<1x1x8xf32>
    %cst_68 = arith.constant dense<0xFF800000> : vector<1x1xf32>
    %168 = vector.multi_reduction <maximumf>, %167, %cst_68 [2] : vector<1x1x8xf32> to vector<1x1xf32>
    %169 = vector.shape_cast %168 : vector<1x1xf32> to vector<1x1x1xf32>
    %170 = vector.broadcast %169 : vector<1x1x1xf32> to vector<1x1x8xf32>
    %171 = arith.subf %167, %170 : vector<1x1x8xf32>
    %172 = math.exp %171 : vector<1x1x8xf32>
    %cst_69 = arith.constant dense<0.000000e+00> : vector<1x1xf32>
    %173 = vector.multi_reduction <add>, %172, %cst_69 [2] : vector<1x1x8xf32> to vector<1x1xf32>
    %174 = vector.shape_cast %173 : vector<1x1xf32> to vector<1x1x1xf32>
    %175 = tpu.reciprocal %174 : vector<1x1x1xf32> -> vector<1x1x1xf32>
    %176 = vector.broadcast %175 : vector<1x1x1xf32> to vector<1x1x8xf32>
    %177 = arith.mulf %172, %176 : vector<1x1x8xf32>
    %178 = arith.truncf %177 : vector<1x1x8xf32> to vector<1x1x8xbf16>
    "tpu.trace_start"() <{level = 10 : i32, message = "bqs,bsh->bqh"}> : () -> ()
    %cst_70 = arith.constant dense<0.000000e+00> : vector<1x1x32xf32>
    %179 = tpu.matmul %178, %63, %cst_70 {dimension_numbers = #tpu.dot_dimension_numbers<[2], [1], [1], [2], [0, 0, 0, 1, 1, 2], [0], [0]>} : vector<1x1x8xbf16>, vector<1x8x32xbf16>, vector<1x1x32xf32> -> vector<1x1x32xf32>
    "tpu.trace_stop"() : () -> ()
    %180 = vector.shape_cast %179 : vector<1x1x32xf32> to vector<1x32xf32>
    "tpu.trace_start"() <{level = 10 : i32, message = "bsh,bqh->bsq"}> : () -> ()
    %cst_71 = arith.constant dense<0.000000e+00> : vector<1x8x1xf32>
    %181 = tpu.matmul %89, %138, %cst_71 {dimension_numbers = #tpu.dot_dimension_numbers<[2], [2], [1], [1], [0, 0, 0, 1, 1, 1], [0], [0]>} : vector<1x8x32xbf16>, vector<1x1x32xbf16>, vector<1x8x1xf32> -> vector<1x8x1xf32>
    "tpu.trace_stop"() : () -> ()
    %182 = tpu.transpose %181, [0, 2, 1] : vector<1x8x1xf32> -> vector<1x1x8xf32>
    %cst_72 = arith.constant 0.176776692 : f32
    %183 = vector.broadcast %cst_72 : f32 to vector<1x1x8xf32>
    %184 = arith.mulf %182, %183 : vector<1x1x8xf32>
    %cst_73 = arith.constant 0.000000e+00 : f32
    %185 = vector.broadcast %cst_73 : f32 to vector<1x1x8xf32>
    %186 = arith.cmpf oeq, %4, %185 : vector<1x1x8xf32>
    %cst_74 = arith.constant -1.000000e+09 : f32
    %187 = vector.broadcast %cst_74 : f32 to vector<1x1x8xf32>
    %188 = arith.select %186, %187, %184 : vector<1x1x8xi1>, vector<1x1x8xf32>
    %cst_75 = arith.constant dense<0xFF800000> : vector<1x1xf32>
    %189 = vector.multi_reduction <maximumf>, %188, %cst_75 [2] : vector<1x1x8xf32> to vector<1x1xf32>
    %190 = vector.shape_cast %189 : vector<1x1xf32> to vector<1x1x1xf32>
    %191 = vector.broadcast %190 : vector<1x1x1xf32> to vector<1x1x8xf32>
    %192 = arith.subf %188, %191 : vector<1x1x8xf32>
    %193 = math.exp %192 : vector<1x1x8xf32>
    %cst_76 = arith.constant dense<0.000000e+00> : vector<1x1xf32>
    %194 = vector.multi_reduction <add>, %193, %cst_76 [2] : vector<1x1x8xf32> to vector<1x1xf32>
    %195 = vector.shape_cast %194 : vector<1x1xf32> to vector<1x1x1xf32>
    %196 = tpu.reciprocal %195 : vector<1x1x1xf32> -> vector<1x1x1xf32>
    %197 = vector.broadcast %196 : vector<1x1x1xf32> to vector<1x1x8xf32>
    %198 = arith.mulf %193, %197 : vector<1x1x8xf32>
    %199 = arith.truncf %198 : vector<1x1x8xf32> to vector<1x1x8xbf16>
    "tpu.trace_start"() <{level = 10 : i32, message = "bqs,bsh->bqh"}> : () -> ()
    %cst_77 = arith.constant dense<0.000000e+00> : vector<1x1x32xf32>
    %200 = tpu.matmul %199, %89, %cst_77 {dimension_numbers = #tpu.dot_dimension_numbers<[2], [1], [1], [2], [0, 0, 0, 1, 1, 2], [0], [0]>} : vector<1x1x8xbf16>, vector<1x8x32xbf16>, vector<1x1x32xf32> -> vector<1x1x32xf32>
    "tpu.trace_stop"() : () -> ()
    %201 = vector.shape_cast %200 : vector<1x1x32xf32> to vector<1x32xf32>
    %202 = arith.truncf %124 : vector<1x32xf32> to vector<1x32xbf16>
    %203 = arith.truncf %126 : vector<1x32xf32> to vector<1x32xbf16>
    %204 = arith.truncf %128 : vector<1x32xf32> to vector<1x32xbf16>
    %205 = arith.truncf %130 : vector<1x32xf32> to vector<1x32xbf16>
    %206 = arith.truncf %159 : vector<1x32xf32> to vector<1x32xbf16>
    %207 = arith.truncf %180 : vector<1x32xf32> to vector<1x32xbf16>
    %208 = arith.truncf %201 : vector<1x32xf32> to vector<1x32xbf16>
    %209 = tpu.concatenate %2, %202, %203, %204, %205, %206, %207, %208 in 1 : vector<1x32xbf16>, vector<1x32xbf16>, vector<1x32xbf16>, vector<1x32xbf16>, vector<1x32xbf16>, vector<1x32xbf16>, vector<1x32xbf16>, vector<1x32xbf16> -> vector<1x256xbf16>
    %c0_78 = arith.constant 0 : index
    %c0_79 = arith.constant 0 : index
    %210 = vector.load %arg10[%c0_78, %c0_79] : memref<256x32xbf16, #tpu.memory_space<vmem>>, vector<256x32xbf16>
    %cst_80 = arith.constant dense<0.000000e+00> : vector<1x32xf32>
    %211 = tpu.matmul %209, %210, %cst_80 {dimension_numbers = #tpu.dot_dimension_numbers<[1], [0], [0], [1], [0, 0, 1, 1], [], []>} : vector<1x256xbf16>, vector<256x32xbf16>, vector<1x32xf32> -> vector<1x32xf32>
    %c0_81 = arith.constant 0 : index
    %c0_82 = arith.constant 0 : index
    %212 = vector.load %arg11[%c0_81, %c0_82] : memref<1x32xf32, #tpu.memory_space<vmem>>, vector<1x32xf32>
    %213 = arith.addf %211, %212 : vector<1x32xf32>
    %cst_83 = arith.constant 0.000000e+00 : f32
    %214 = vector.broadcast %cst_83 : f32 to vector<1x32xf32>
    %215 = arith.maximumf %213, %214 : vector<1x32xf32>
    %216 = arith.truncf %215 : vector<1x32xf32> to vector<1x32xbf16>
    %c0_84 = arith.constant 0 : index
    %c0_85 = arith.constant 0 : index
    %217 = vector.load %arg12[%c0_84, %c0_85] : memref<32x4xbf16, #tpu.memory_space<vmem>>, vector<32x4xbf16>
    %cst_86 = arith.constant dense<0.000000e+00> : vector<1x4xf32>
    %218 = tpu.matmul %216, %217, %cst_86 {dimension_numbers = #tpu.dot_dimension_numbers<[1], [0], [0], [1], [0, 0, 1, 1], [], []>} : vector<1x32xbf16>, vector<32x4xbf16>, vector<1x4xf32> -> vector<1x4xf32>
    %c0_87 = arith.constant 0 : index
    %c0_88 = arith.constant 0 : index
    %219 = vector.load %arg13[%c0_87, %c0_88] : memref<1x4xf32, #tpu.memory_space<vmem>>, vector<1x4xf32>
    %220 = arith.addf %218, %219 : vector<1x4xf32>
    %221 = vector.shape_cast %220 : vector<1x4xf32> to vector<1x1x4xf32>
    %c0_89 = arith.constant 0 : index
    %c0_90 = arith.constant 0 : index
    %c0_91 = arith.constant 0 : index
    %222 = vector.load %arg14[%c0_89, %c0_90, %c0_91] : memref<1x1x4xf32, #tpu.memory_space<vmem>>, vector<1x1x4xf32>
    tpu.vector_store %arg14[%c0_89, %c0_90, %c0_91], %221 {strides = array<i32>} : memref<1x1x4xf32, #tpu.memory_space<vmem>>, vector<1x1x4xf32>,
    return
  }
  func.func @transform_0(%arg0: i32) -> (i32, i32, i32) {
    %c0_i32 = arith.constant 0 : i32
    %c0_i32_0 = arith.constant 0 : i32
    %c0_i32_1 = arith.constant 0 : i32
    return %arg0, %c0_i32, %c0_i32_0 : i32, i32, i32
  }
  func.func @transform_1(%arg0: i32) -> (i32, i32, i32) {
    %c0_i32 = arith.constant 0 : i32
    %c0_i32_0 = arith.constant 0 : i32
    %c0_i32_1 = arith.constant 0 : i32
    return %arg0, %c0_i32, %c0_i32_0 : i32, i32, i32
  }
  func.func @transform_2(%arg0: i32) -> (i32, i32, i32) {
    %c0_i32 = arith.constant 0 : i32
    %c0_i32_0 = arith.constant 0 : i32
    %c0_i32_1 = arith.constant 0 : i32
    return %arg0, %c0_i32, %c0_i32_0 : i32, i32, i32
  }
  func.func @transform_3(%arg0: i32) -> (i32, i32) {
    %c0_i32 = arith.constant 0 : i32
    %c0_i32_0 = arith.constant 0 : i32
    %c0_i32_1 = arith.constant 0 : i32
    return %c0_i32, %c0_i32_0 : i32, i32
  }
  func.func @transform_4(%arg0: i32) -> (i32, i32) {
    %c0_i32 = arith.constant 0 : i32
    %c0_i32_0 = arith.constant 0 : i32
    %c0_i32_1 = arith.constant 0 : i32
    return %c0_i32, %c0_i32_0 : i32, i32
  }
  func.func @transform_5(%arg0: i32) -> (i32, i32) {
    %c0_i32 = arith.constant 0 : i32
    %c0_i32_0 = arith.constant 0 : i32
    %c0_i32_1 = arith.constant 0 : i32
    return %c0_i32, %c0_i32_0 : i32, i32
  }
  func.func @transform_6(%arg0: i32) -> (i32, i32) {
    %c0_i32 = arith.constant 0 : i32
    %c0_i32_0 = arith.constant 0 : i32
    %c0_i32_1 = arith.constant 0 : i32
    return %c0_i32, %c0_i32_0 : i32, i32
  }
  func.func @transform_7(%arg0: i32) -> (i32, i32) {
    %c0_i32 = arith.constant 0 : i32
    %c0_i32_0 = arith.constant 0 : i32
    %c0_i32_1 = arith.constant 0 : i32
    return %c0_i32, %c0_i32_0 : i32, i32
  }
  func.func @transform_8(%arg0: i32) -> (i32, i32) {
    %c0_i32 = arith.constant 0 : i32
    %c0_i32_0 = arith.constant 0 : i32
    %c0_i32_1 = arith.constant 0 : i32
    return %c0_i32, %c0_i32_0 : i32, i32
  }
  func.func @transform_9(%arg0: i32) -> (i32, i32) {
    %c0_i32 = arith.constant 0 : i32
    %c0_i32_0 = arith.constant 0 : i32
    %c0_i32_1 = arith.constant 0 : i32
    return %c0_i32, %c0_i32_0 : i32, i32
  }
  func.func @transform_10(%arg0: i32) -> (i32, i32) {
    %c0_i32 = arith.constant 0 : i32
    %c0_i32_0 = arith.constant 0 : i32
    %c0_i32_1 = arith.constant 0 : i32
    return %c0_i32, %c0_i32_0 : i32, i32
  }
  func.func @transform_11(%arg0: i32) -> (i32, i32) {
    %c0_i32 = arith.constant 0 : i32
    %c0_i32_0 = arith.constant 0 : i32
    %c0_i32_1 = arith.constant 0 : i32
    return %c0_i32, %c0_i32_0 : i32, i32
  }
  func.func @transform_12(%arg0: i32) -> (i32, i32) {
    %c0_i32 = arith.constant 0 : i32
    %c0_i32_0 = arith.constant 0 : i32
    %c0_i32_1 = arith.constant 0 : i32
    return %c0_i32, %c0_i32_0 : i32, i32
  }
  func.func @transform_13(%arg0: i32) -> (i32, i32, i32) {
    %c0_i32 = arith.constant 0 : i32
    %c0_i32_0 = arith.constant 0 : i32
    %c0_i32_1 = arith.constant 0 : i32
    return %arg0, %c0_i32, %c0_i32_0 : i32, i32, i32
  }
}

</mosaic_0001>

<llo_original>
// kernel: tpu_custom_call.1
$region0: #{tpu_custom_call.1}
  #allocation0 [shape = 'u32[]', space=smem, size = 0x4, offset = 0x4, fixed_abs, tag = 'smem constant byte address 0x4 - core index']
  #allocation1 [shape = 'u32[144,128]{1,0:T(1,128)}', space=vmem, size = 0x12000, scoped, tag = 'internal scratch']
  %s0 = inlined_call_operand.vmem [shape: bf16[2,8,32], index: 0, kind: input, shape index: {}]
  %s1 = inlined_call_operand.vmem [shape: bf16[2,1,32], index: 1, kind: input, shape index: {}]
  %s2 = inlined_call_operand.vmem [shape: f32[2,3,8], index: 2, kind: input, shape index: {}]
  %s3 = inlined_call_operand.vmem [shape: bf16[32,160], index: 3, kind: input, shape index: {}]
  %s4 = inlined_call_operand.vmem [shape: f32[1,64], index: 4, kind: input, shape index: {}]
  %s5 = inlined_call_operand.vmem [shape: bf16[96,32], index: 5, kind: input, shape index: {}]
  %s6 = inlined_call_operand.vmem [shape: f32[1,32], index: 6, kind: input, shape index: {}]
  %s7 = inlined_call_operand.vmem [shape: bf16[64,32], index: 7, kind: input, shape index: {}]
  %s8 = inlined_call_operand.vmem [shape: f32[1,32], index: 8, kind: input, shape index: {}]
  %s9 = inlined_call_operand.vmem [shape: bf16[256,32], index: 9, kind: input, shape index: {}]
  %s10 = inlined_call_operand.vmem [shape: f32[1,32], index: 10, kind: input, shape index: {}]
  %s11 = inlined_call_operand.vmem [shape: bf16[32,4], index: 11, kind: input, shape index: {}]
  %s12 = inlined_call_operand.vmem [shape: f32[1,4], index: 12, kind: input, shape index: {}]
  %s13 = inlined_call_operand.hbm [shape: f32[2,1,4], index: 13, kind: output, shape index: {}]
  %s14 = sld [smem:[#allocation0]]
  $region85: #{tpu_custom_call.1} parent=0
    _
  %s16 = ssub.s32 1, %s14
  %s17 = scalar_select 0, %s16, %s14
  $region1: #{tpu_custom_call.1} parent=0
    #allocation2 [shape = 'u8[1024]{0}', space=vmem, size = 0x400, scoped, tag = 'output window, operand 0']
    #allocation3 [shape = 's32[2]{0}', space=sflag, size = 0x8, scoped, tag = 'scoped memory for tpu_custom_call.1']
    %18 = vsyncpa [#allocation3], 0
    %s19 = scalar_lea.sflag [#allocation3], 1
    %20 = vsyncpa %s19, 0
    loop: start=0, step=1, limit=4
    $region2: #{tpu_custom_call.1} parent=1 // loop_pre_header
      _
    $region3: #{tpu_custom_call.1} parent=1 // loop_header
      %s22 = sphi 0, %s26
      %p23 = scmp.ge.s32.totalorder %s22, 4
      %s32 = sphi 0, %s34
      %s35 = sphi 0, %s32
      %s36 = sphi 0, %s35
      %s52 = sphi 0, %s36
      %s58 = sphi 0, %s60
      %s61 = sphi 0, %s58
      %s62 = sphi 0, %s61
      %s78 = sphi 0, %s62
      %s84 = sphi 0, %s86
      %s87 = sphi 0, %s84
      %s88 = sphi 0, %s87
      %s104 = sphi 0, %s88
      %s108 = sphi 0, %s108
      %s110 = sphi 0, %s108
      %s111 = sphi 0, %s110
      %s125 = sphi 0, %s111
      %s129 = sphi 0, %s129
      %s131 = sphi 0, %s129
      %s132 = sphi 0, %s131
      %s146 = sphi 0, %s132
      %s150 = sphi 0, %s150
      %s152 = sphi 0, %s150
      %s153 = sphi 0, %s152
      %s167 = sphi 0, %s153
      %s171 = sphi 0, %s171
      %s173 = sphi 0, %s171
      %s174 = sphi 0, %s173
      %s188 = sphi 0, %s174
      %s192 = sphi 0, %s192
      %s194 = sphi 0, %s192
      %s195 = sphi 0, %s194
      %s209 = sphi 0, %s195
      %s213 = sphi 0, %s213
      %s215 = sphi 0, %s213
      %s216 = sphi 0, %s215
      %s230 = sphi 0, %s216
      %s234 = sphi 0, %s234
      %s236 = sphi 0, %s234
      %s237 = sphi 0, %s236
      %s251 = sphi 0, %s237
      %s255 = sphi 0, %s255
      %s257 = sphi 0, %s255
      %s258 = sphi 0, %s257
      %s272 = sphi 0, %s258
      %s276 = sphi 0, %s276
      %s278 = sphi 0, %s276
      %s279 = sphi 0, %s278
      %s293 = sphi 0, %s279
      %s297 = sphi 0, %s297
      %s299 = sphi 0, %s297
      %s300 = sphi 0, %s299
      %s314 = sphi 0, %s300
      %s320 = sphi 0, %s322
      %s323 = sphi 0, %s320
      %s324 = sphi 0, %s323
      %s340 = sphi 0, %s324
    $region4: #{tpu_custom_call.1} parent=1 // loop_header_branch
      %25 = sbr.rel (%p23) target = $region8
    $region5: #{tpu_custom_call.1} parent=1 // loop_body
      %s27 = ssub.s32 %s22, 1
      %s28 = ssub.s32 %s22, 2
      %s29 = sadd.s32 %s22, 1
      %s30 = ssub.s32 %s22, %s29
      %p31 = scmp.eq.s32.totalorder %s30, 0
      %s33 = sadd.s32 %s32, 1
      %s34 = scalar_select %p31, %s32, %s33
      %p37 = pneg %p31
      %p38 = scmp.eq.s32.totalorder %s22, 1
      %p39 = por %p37, %p38
      %p40 = scmp.ne.s32.totalorder %s32, %s35
      %p41 = scmp.eq.s32.totalorder %s22, 0
      %p42 = por %p40, %p41
      %p43 = scmp.ne.s32.totalorder %s32, %s35
      %p44 = scmp.eq.s32.totalorder %s27, 1
      %p45 = por %p43, %p44
      %p46 = scmp.ne.s32.totalorder %s35, %s36
      %p47 = scmp.eq.s32.totalorder %s27, 0
      %p48 = por %p46, %p47
      %p49 = scmp.ne.s32.totalorder %s35, %s36
      %p50 = scmp.eq.s32.totalorder %s28, 1
      %p51 = por %p49, %p50
      %p53 = scmp.ne.s32.totalorder %s36, %s52
      %p54 = scmp.eq.s32.totalorder %s28, 0
      %p55 = por %p53, %p54
      %s56 = ssub.s32 %s22, %s29
      %p57 = scmp.eq.s32.totalorder %s56, 0
      %s59 = sadd.s32 %s58, 1
      %s60 = scalar_select %p57, %s58, %s59
      %p63 = pneg %p57
      %p64 = scmp.eq.s32.totalorder %s22, 1
      %p65 = por %p63, %p64
      %p66 = scmp.ne.s32.totalorder %s58, %s61
      %p67 = scmp.eq.s32.totalorder %s22, 0
      %p68 = por %p66, %p67
      %p69 = scmp.ne.s32.totalorder %s58, %s61
      %p70 = scmp.eq.s32.totalorder %s27, 1
      %p71 = por %p69, %p70
      %p72 = scmp.ne.s32.totalorder %s61, %s62
      %p73 = scmp.eq.s32.totalorder %s27, 0
      %p74 = por %p72, %p73
      %p75 = scmp.ne.s32.totalorder %s61, %s62
      %p76 = scmp.eq.s32.totalorder %s28, 1
      %p77 = por %p75, %p76
      %p79 = scmp.ne.s32.totalorder %s62, %s78
      %p80 = scmp.eq.s32.totalorder %s28, 0
      %p81 = por %p79, %p80
      %s82 = ssub.s32 %s22, %s29
      %p83 = scmp.eq.s32.totalorder %s82, 0
      %s85 = sadd.s32 %s84, 1
      %s86 = scalar_select %p83, %s84, %s85
      %p89 = pneg %p83
      %p90 = scmp.eq.s32.totalorder %s22, 1
      %p91 = por %p89, %p90
      %p92 = scmp.ne.s32.totalorder %s84, %s87
      %p93 = scmp.eq.s32.totalorder %s22, 0
      %p94 = por %p92, %p93
      %p95 = scmp.ne.s32.totalorder %s84, %s87
      %p96 = scmp.eq.s32.totalorder %s27, 1
      %p97 = por %p95, %p96
      %p98 = scmp.ne.s32.totalorder %s87, %s88
      %p99 = scmp.eq.s32.totalorder %s27, 0
      %p100 = por %p98, %p99
      %p101 = scmp.ne.s32.totalorder %s87, %s88
      %p102 = scmp.eq.s32.totalorder %s28, 1
      %p103 = por %p101, %p102
      %p105 = scmp.ne.s32.totalorder %s88, %s104
      %p106 = scmp.eq.s32.totalorder %s28, 0
      %p107 = por %p105, %p106
      %s109 = sadd.s32 %s108, 1
      %p112 = scmp.eq.s32.totalorder %s22, 1
      %p113 = scmp.ne.s32.totalorder %s108, %s110
      %p114 = scmp.eq.s32.totalorder %s22, 0
      %p115 = por %p113, %p114
      %p116 = scmp.ne.s32.totalorder %s108, %s110
      %p117 = scmp.eq.s32.totalorder %s27, 1
      %p118 = por %p116, %p117
      %p119 = scmp.ne.s32.totalorder %s110, %s111
      %p120 = scmp.eq.s32.totalorder %s27, 0
      %p121 = por %p119, %p120
      %p122 = scmp.ne.s32.totalorder %s110, %s111
      %p123 = scmp.eq.s32.totalorder %s28, 1
      %p124 = por %p122, %p123
      %p126 = scmp.ne.s32.totalorder %s111, %s125
      %p127 = scmp.eq.s32.totalorder %s28, 0
      %p128 = por %p126, %p127
      %s130 = sadd.s32 %s129, 1
      %p133 = scmp.eq.s32.totalorder %s22, 1
      %p134 = scmp.ne.s32.totalorder %s129, %s131
      %p135 = scmp.eq.s32.totalorder %s22, 0
      %p136 = por %p134, %p135
      %p137 = scmp.ne.s32.totalorder %s129, %s131
      %p138 = scmp.eq.s32.totalorder %s27, 1
      %p139 = por %p137, %p138
      %p140 = scmp.ne.s32.totalorder %s131, %s132
      %p141 = scmp.eq.s32.totalorder %s27, 0
      %p142 = por %p140, %p141
      %p143 = scmp.ne.s32.totalorder %s131, %s132
      %p144 = scmp.eq.s32.totalorder %s28, 1
      %p145 = por %p143, %p144
      %p147 = scmp.ne.s32.totalorder %s132, %s146
      %p148 = scmp.eq.s32.totalorder %s28, 0
      %p149 = por %p147, %p148
      %s151 = sadd.s32 %s150, 1
      %p154 = scmp.eq.s32.totalorder %s22, 1
      %p155 = scmp.ne.s32.totalorder %s150, %s152
      %p156 = scmp.eq.s32.totalorder %s22, 0
      %p157 = por %p155, %p156
      %p158 = scmp.ne.s32.totalorder %s150, %s152
      %p159 = scmp.eq.s32.totalorder %s27, 1
      %p160 = por %p158, %p159
      %p161 = scmp.ne.s32.totalorder %s152, %s153
      %p162 = scmp.eq.s32.totalorder %s27, 0
      %p163 = por %p161, %p162
      %p164 = scmp.ne.s32.totalorder %s152, %s153
      %p165 = scmp.eq.s32.totalorder %s28, 1
      %p166 = por %p164, %p165
      %p168 = scmp.ne.s32.totalorder %s153, %s167
      %p169 = scmp.eq.s32.totalorder %s28, 0
      %p170 = por %p168, %p169
      %s172 = sadd.s32 %s171, 1
      %p175 = scmp.eq.s32.totalorder %s22, 1
      %p176 = scmp.ne.s32.totalorder %s171, %s173
      %p177 = scmp.eq.s32.totalorder %s22, 0
      %p178 = por %p176, %p177
      %p179 = scmp.ne.s32.totalorder %s171, %s173
      %p180 = scmp.eq.s32.totalorder %s27, 1
      %p181 = por %p179, %p180
      %p182 = scmp.ne.s32.totalorder %s173, %s174
      %p183 = scmp.eq.s32.totalorder %s27, 0
      %p184 = por %p182, %p183
      %p185 = scmp.ne.s32.totalorder %s173, %s174
      %p186 = scmp.eq.s32.totalorder %s28, 1
      %p187 = por %p185, %p186
      %p189 = scmp.ne.s32.totalorder %s174, %s188
      %p190 = scmp.eq.s32.totalorder %s28, 0
      %p191 = por %p189, %p190
      %s193 = sadd.s32 %s192, 1
      %p196 = scmp.eq.s32.totalorder %s22, 1
      %p197 = scmp.ne.s32.totalorder %s192, %s194
      %p198 = scmp.eq.s32.totalorder %s22, 0
      %p199 = por %p197, %p198
      %p200 = scmp.ne.s32.totalorder %s192, %s194
      %p201 = scmp.eq.s32.totalorder %s27, 1
      %p202 = por %p200, %p201
      %p203 = scmp.ne.s32.totalorder %s194, %s195
      %p204 = scmp.eq.s32.totalorder %s27, 0
      %p205 = por %p203, %p204
      %p206 = scmp.ne.s32.totalorder %s194, %s195
      %p207 = scmp.eq.s32.totalorder %s28, 1
      %p208 = por %p206, %p207
      %p210 = scmp.ne.s32.totalorder %s195, %s209
      %p211 = scmp.eq.s32.totalorder %s28, 0
      %p212 = por %p210, %p211
      %s214 = sadd.s32 %s213, 1
      %p217 = scmp.eq.s32.totalorder %s22, 1
      %p218 = scmp.ne.s32.totalorder %s213, %s215
      %p219 = scmp.eq.s32.totalorder %s22, 0
      %p220 = por %p218, %p219
      %p221 = scmp.ne.s32.totalorder %s213, %s215
      %p222 = scmp.eq.s32.totalorder %s27, 1
      %p223 = por %p221, %p222
      %p224 = scmp.ne.s32.totalorder %s215, %s216
      %p225 = scmp.eq.s32.totalorder %s27, 0
      %p226 = por %p224, %p225
      %p227 = scmp.ne.s32.totalorder %s215, %s216
      %p228 = scmp.eq.s32.totalorder %s28, 1
      %p229 = por %p227, %p228
      %p231 = scmp.ne.s32.totalorder %s216, %s230
      %p232 = scmp.eq.s32.totalorder %s28, 0
      %p233 = por %p231, %p232
      %s235 = sadd.s32 %s234, 1
      %p238 = scmp.eq.s32.totalorder %s22, 1
      %p239 = scmp.ne.s32.totalorder %s234, %s236
      %p240 = scmp.eq.s32.totalorder %s22, 0
      %p241 = por %p239, %p240
      %p242 = scmp.ne.s32.totalorder %s234, %s236
      %p243 = scmp.eq.s32.totalorder %s27, 1
      %p244 = por %p242, %p243
      %p245 = scmp.ne.s32.totalorder %s236, %s237
      %p246 = scmp.eq.s32.totalorder %s27, 0
      %p247 = por %p245, %p246
      %p248 = scmp.ne.s32.totalorder %s236, %s237
      %p249 = scmp.eq.s32.totalorder %s28, 1
      %p250 = por %p248, %p249
      %p252 = scmp.ne.s32.totalorder %s237, %s251
      %p253 = scmp.eq.s32.totalorder %s28, 0
      %p254 = por %p252, %p253
      %s256 = sadd.s32 %s255, 1
      %p259 = scmp.eq.s32.totalorder %s22, 1
      %p260 = scmp.ne.s32.totalorder %s255, %s257
      %p261 = scmp.eq.s32.totalorder %s22, 0
      %p262 = por %p260, %p261
      %p263 = scmp.ne.s32.totalorder %s255, %s257
      %p264 = scmp.eq.s32.totalorder %s27, 1
      %p265 = por %p263, %p264
      %p266 = scmp.ne.s32.totalorder %s257, %s258
      %p267 = scmp.eq.s32.totalorder %s27, 0
      %p268 = por %p266, %p267
      %p269 = scmp.ne.s32.totalorder %s257, %s258
      %p270 = scmp.eq.s32.totalorder %s28, 1
      %p271 = por %p269, %p270
      %p273 = scmp.ne.s32.totalorder %s258, %s272
      %p274 = scmp.eq.s32.totalorder %s28, 0
      %p275 = por %p273, %p274
      %s277 = sadd.s32 %s276, 1
      %p280 = scmp.eq.s32.totalorder %s22, 1
      %p281 = scmp.ne.s32.totalorder %s276, %s278
      %p282 = scmp.eq.s32.totalorder %s22, 0
      %p283 = por %p281, %p282
      %p284 = scmp.ne.s32.totalorder %s276, %s278
      %p285 = scmp.eq.s32.totalorder %s27, 1
      %p286 = por %p284, %p285
      %p287 = scmp.ne.s32.totalorder %s278, %s279
      %p288 = scmp.eq.s32.totalorder %s27, 0
      %p289 = por %p287, %p288
      %p290 = scmp.ne.s32.totalorder %s278, %s279
      %p291 = scmp.eq.s32.totalorder %s28, 1
      %p292 = por %p290, %p291
      %p294 = scmp.ne.s32.totalorder %s279, %s293
      %p295 = scmp.eq.s32.totalorder %s28, 0
      %p296 = por %p294, %p295
      %s298 = sadd.s32 %s297, 1
      %p301 = scmp.eq.s32.totalorder %s22, 1
      %p302 = scmp.ne.s32.totalorder %s297, %s299
      %p303 = scmp.eq.s32.totalorder %s22, 0
      %p304 = por %p302, %p303
      %p305 = scmp.ne.s32.totalorder %s297, %s299
      %p306 = scmp.eq.s32.totalorder %s27, 1
      %p307 = por %p305, %p306
      %p308 = scmp.ne.s32.totalorder %s299, %s300
      %p309 = scmp.eq.s32.totalorder %s27, 0
      %p310 = por %p308, %p309
      %p311 = scmp.ne.s32.totalorder %s299, %s300
      %p312 = scmp.eq.s32.totalorder %s28, 1
      %p313 = por %p311, %p312
      %p315 = scmp.ne.s32.totalorder %s300, %s314
      %p316 = scmp.eq.s32.totalorder %s28, 0
      %p317 = por %p315, %p316
      %s318 = ssub.s32 %s22, %s29
      %p319 = scmp.eq.s32.totalorder %s318, 0
      %s321 = sadd.s32 %s320, 1
      %s322 = scalar_select %p319, %s320, %s321
      %p325 = pneg %p319
      %p326 = scmp.eq.s32.totalorder %s22, 1
      %p327 = por %p325, %p326
      %p328 = scmp.ne.s32.totalorder %s320, %s323
      %p329 = scmp.eq.s32.totalorder %s22, 0
      %p330 = por %p328, %p329
      %p331 = scmp.ne.s32.totalorder %s320, %s323
      %p332 = scmp.eq.s32.totalorder %s27, 1
      %p333 = por %p331, %p332
      %p334 = scmp.ne.s32.totalorder %s323, %s324
      %p335 = scmp.eq.s32.totalorder %s27, 0
      %p336 = por %p334, %p335
      %p337 = scmp.ne.s32.totalorder %s323, %s324
      %p338 = scmp.eq.s32.totalorder %s28, 1
      %p339 = por %p337, %p338
      %p341 = scmp.ne.s32.totalorder %s324, %s340
      %p342 = scmp.eq.s32.totalorder %s28, 0
      %p343 = por %p341, %p342
      %p344 = scmp.le.s32.totalorder 1, %s22
      %p345 = scmp.lt.s32.totalorder %s22, 3
      %p346 = pnand %p344, %p345
      %p347 = pneg %p346
      // Predicated region
      $region9: #{tpu_custom_call.1} parent=5 // pred_check
        _
      $region10: #{tpu_custom_call.1} parent=5 // pred_check_branch
        %349 = sbr.rel (%p346) target = $region12
      $region11: #{tpu_custom_call.1} parent=5 // pred_region
        %s350 = ssub.s32 %s22, 1
        // Predicated region
        $region13: #{tpu_custom_call.1} parent=11 // pred_check
          %p351 = pneg %p121
        $region14: #{tpu_custom_call.1} parent=11 // pred_check_branch
          %353 = sbr.rel (%p351) target = $region16
        $region15: #{tpu_custom_call.1} parent=11 // pred_region
          _
        $region16: #{tpu_custom_call.1} parent=11 // pred_fallthru
          _
        // Predicated region
        $region17: #{tpu_custom_call.1} parent=11 // pred_check
          %p354 = pneg %p142
        $region18: #{tpu_custom_call.1} parent=11 // pred_check_branch
          %356 = sbr.rel (%p354) target = $region20
        $region19: #{tpu_custom_call.1} parent=11 // pred_region
          _
        $region20: #{tpu_custom_call.1} parent=11 // pred_fallthru
          _
        // Predicated region
        $region21: #{tpu_custom_call.1} parent=11 // pred_check
          %p357 = pneg %p163
        $region22: #{tpu_custom_call.1} parent=11 // pred_check_branch
          %359 = sbr.rel (%p357) target = $region24
        $region23: #{tpu_custom_call.1} parent=11 // pred_region
          _
        $region24: #{tpu_custom_call.1} parent=11 // pred_fallthru
          _
        // Predicated region
        $region25: #{tpu_custom_call.1} parent=11 // pred_check
          %p360 = pneg %p184
        $region26: #{tpu_custom_call.1} parent=11 // pred_check_branch
          %362 = sbr.rel (%p360) target = $region28
        $region27: #{tpu_custom_call.1} parent=11 // pred_region
          _
        $region28: #{tpu_custom_call.1} parent=11 // pred_fallthru
          _
        // Predicated region
        $region29: #{tpu_custom_call.1} parent=11 // pred_check
          %p363 = pneg %p205
        $region30: #{tpu_custom_call.1} parent=11 // pred_check_branch
          %365 = sbr.rel (%p363) target = $region32
        $region31: #{tpu_custom_call.1} parent=11 // pred_region
          _
        $region32: #{tpu_custom_call.1} parent=11 // pred_fallthru
          _
        // Predicated region
        $region33: #{tpu_custom_call.1} parent=11 // pred_check
          %p366 = pneg %p226
        $region34: #{tpu_custom_call.1} parent=11 // pred_check_branch
          %368 = sbr.rel (%p366) target = $region36
        $region35: #{tpu_custom_call.1} parent=11 // pred_region
          _
        $region36: #{tpu_custom_call.1} parent=11 // pred_fallthru
          _
        // Predicated region
        $region37: #{tpu_custom_call.1} parent=11 // pred_check
          %p369 = pneg %p247
        $region38: #{tpu_custom_call.1} parent=11 // pred_check_branch
          %371 = sbr.rel (%p369) target = $region40
        $region39: #{tpu_custom_call.1} parent=11 // pred_region
          _
        $region40: #{tpu_custom_call.1} parent=11 // pred_fallthru
          _
        // Predicated region
        $region41: #{tpu_custom_call.1} parent=11 // pred_check
          %p372 = pneg %p268
        $region42: #{tpu_custom_call.1} parent=11 // pred_check_branch
          %374 = sbr.rel (%p372) target = $region44
        $region43: #{tpu_custom_call.1} parent=11 // pred_region
          _
        $region44: #{tpu_custom_call.1} parent=11 // pred_fallthru
          _
        // Predicated region
        $region45: #{tpu_custom_call.1} parent=11 // pred_check
          %p375 = pneg %p289
        $region46: #{tpu_custom_call.1} parent=11 // pred_check_branch
          %377 = sbr.rel (%p375) target = $region48
        $region47: #{tpu_custom_call.1} parent=11 // pred_region
          _
        $region48: #{tpu_custom_call.1} parent=11 // pred_fallthru
          _
        // Predicated region
        $region49: #{tpu_custom_call.1} parent=11 // pred_check
          %p378 = pneg %p310
        $region50: #{tpu_custom_call.1} parent=11 // pred_check_branch
          %380 = sbr.rel (%p378) target = $region52
        $region51: #{tpu_custom_call.1} parent=11 // pred_region
          _
        $region52: #{tpu_custom_call.1} parent=11 // pred_fallthru
          _
      $region12: #{tpu_custom_call.1} parent=5 // pred_fallthru
        _
      %p381 = scmp.lt.s32.totalorder %s22, 2
      // Predicated region
      $region53: #{tpu_custom_call.1} parent=5 // pred_check
        %p382 = pneg %p381
      $region54: #{tpu_custom_call.1} parent=5 // pred_check_branch
        %384 = sbr.rel (%p382) target = $region56
      $region55: #{tpu_custom_call.1} parent=5 // pred_region
        // Predicated region
        $region57: #{tpu_custom_call.1} parent=55 // pred_check
          %p385 = pneg %p42
        $region58: #{tpu_custom_call.1} parent=55 // pred_check_branch
          %387 = sbr.rel (%p385) target = $region60
        $region59: #{tpu_custom_call.1} parent=55 // pred_region
          %p388 = scmp.lt.s32.totalorder %s22, 1
          %s389 = scalar_select %p388, %s22, 1
          %s390 = smul.addr %s389, 4
          %s391 = scalar_lea.vmem %s0, %s390
        $region60: #{tpu_custom_call.1} parent=55 // pred_fallthru
          _
        // Predicated region
        $region61: #{tpu_custom_call.1} parent=55 // pred_check
          %p392 = pneg %p68
        $region62: #{tpu_custom_call.1} parent=55 // pred_check_branch
          %394 = sbr.rel (%p392) target = $region64
        $region63: #{tpu_custom_call.1} parent=55 // pred_region
          %p395 = scmp.lt.s32.totalorder %s22, 1
          %s396 = scalar_select %p395, %s22, 1
          %s397 = scalar_lea.vmem %s1, %s396
        $region64: #{tpu_custom_call.1} parent=55 // pred_fallthru
          _
        // Predicated region
        $region65: #{tpu_custom_call.1} parent=55 // pred_check
          %p398 = pneg %p94
        $region66: #{tpu_custom_call.1} parent=55 // pred_check_branch
          %400 = sbr.rel (%p398) target = $region68
        $region67: #{tpu_custom_call.1} parent=55 // pred_region
          %p401 = scmp.lt.s32.totalorder %s22, 1
          %s402 = scalar_select %p401, %s22, 1
          %s403 = smul.addr %s402, 4
          %s404 = scalar_lea.vmem %s2, %s403
        $region68: #{tpu_custom_call.1} parent=55 // pred_fallthru
          _
      $region56: #{tpu_custom_call.1} parent=5 // pred_fallthru
        _
      %p405 = scmp.le.s32.totalorder 1, %s22
      %p406 = scmp.lt.s32.totalorder %s22, 3
      %p407 = pnand %p405, %p406
      %p408 = pneg %p407
      // Predicated region
      $region69: #{tpu_custom_call.1} parent=5 // pred_check
        _
      $region70: #{tpu_custom_call.1} parent=5 // pred_check_branch
        %410 = sbr.rel (%p407) target = $region72
      $region71: #{tpu_custom_call.1} parent=5 // pred_region
        %s411 = ssub.s32 %s22, 1
        %p412 = scmp.lt.s32.totalorder %s27, 1
        %s413 = scalar_select %p412, %s27, 1
        %s414 = smul.addr %s413, 4
        %s415 = scalar_lea.vmem %s0, %s414
        %p416 = pneg %p48
        %p417 = pneg %p45
        %p418 = scmp.lt.s32.totalorder %s27, 1
        %s419 = scalar_select %p418, %s27, 1
        %s420 = scalar_lea.vmem %s1, %s419
        %p421 = pneg %p74
        %p422 = pneg %p71
        %p423 = scmp.lt.s32.totalorder %s27, 1
        %s424 = scalar_select %p423, %s27, 1
        %s425 = smul.addr %s424, 4
        %s426 = scalar_lea.vmem %s2, %s425
        %p427 = pneg %p100
        %p428 = pneg %p97
        %p429 = pneg %p121
        %p430 = pneg %p118
        %p431 = pneg %p142
        %p432 = pneg %p139
        %p433 = pneg %p163
        %p434 = pneg %p160
        %p435 = pneg %p184
        %p436 = pneg %p181
        %p437 = pneg %p205
        %p438 = pneg %p202
        %p439 = pneg %p226
        %p440 = pneg %p223
        %p441 = pneg %p247
        %p442 = pneg %p244
        %p443 = pneg %p268
        %p444 = pneg %p265
        %p445 = pneg %p289
        %p446 = pneg %p286
        %p447 = pneg %p310
        %p448 = pneg %p307
        %p449 = pneg %p336
        %p450 = pneg %p333
        %s451 = sand.u32 %s323, 1
        %s452 = scalar_lea.sflag [#allocation3], %s451
        %s453 = sand.u32 %s323, 1
        %s454 = scalar_lea.vmem [#allocation2], %s453
        %p455 = scmp.lt.s32.totalorder %s27, 1
        %s456 = scalar_select %p455, %s27, 1
        %s457 = smul.addr %s456, 4
        %s458 = scalar_lea.vmem %s0, %s457
        %p459 = scmp.lt.s32.totalorder %s27, 1
        %s460 = scalar_select %p459, %s27, 1
        %s461 = scalar_lea.vmem %s1, %s460
        %p462 = scmp.lt.s32.totalorder %s27, 1
        %s463 = scalar_select %p462, %s27, 1
        %s464 = smul.addr %s463, 4
        %s465 = scalar_lea.vmem %s2, %s464
        %v467 = vld [vmem:[%s458] sm:$0xf]
        %v468 = vld [vmem:[%s461] sm:$0x1]
        %v469 = vld [vmem:[%s465] sm:$0x7]
        %v471 = vrot.slane %v469, 1
        %473 = vxpose.xlu0.b32.start [1/16] %v471, 128
        %474 = vxpose.xlu0.b32.cont [2/16] 0.0, 128
        %475 = vxpose.xlu0.b32.cont [3/16] 0.0, 128
        %476 = vxpose.xlu0.b32.cont [4/16] 0.0, 128
        %477 = vxpose.xlu0.b32.cont [5/16] 0.0, 128
        %478 = vxpose.xlu0.b32.cont [6/16] 0.0, 128
        %479 = vxpose.xlu0.b32.cont [7/16] 0.0, 128
        %480 = vxpose.xlu0.b32.cont [8/16] 0.0, 128
        %481 = vxpose.xlu0.b32.cont [9/16] 0.0, 128
        %482 = vxpose.xlu0.b32.cont [10/16] 0.0, 128
        %483 = vxpose.xlu0.b32.cont [11/16] 0.0, 128
        %484 = vxpose.xlu0.b32.cont [12/16] 0.0, 128
        %485 = vxpose.xlu0.b32.cont [13/16] 0.0, 128
        %486 = vxpose.xlu0.b32.cont [14/16] 0.0, 128
        %487 = vxpose.xlu0.b32.cont [15/16] 0.0, 128
        %488 = vxpose.xlu0.b32.end [16/16] 0.0, 128
        %v489 = vpop.trf.xlu0
        %v490 = vpop.trf.xlu0
        %v491 = vpop.trf.xlu0
        %v492 = vpop.trf.xlu0
        %v493 = vpop.trf.xlu0
        %v494 = vpop.trf.xlu0
        %v495 = vpop.trf.xlu0
        %v496 = vpop.trf.xlu0
        %v497 = vpop.trf.xlu0
        %v498 = vpop.trf.xlu0
        %v499 = vpop.trf.xlu0
        %v500 = vpop.trf.xlu0
        %v501 = vpop.trf.xlu0
        %v502 = vpop.trf.xlu0
        %v503 = vpop.trf.xlu0
        %v504 = vpop.trf.xlu0
        %v505 = vunpack.c.l.bf16 %v467
        %vm506 = vcmp.eq.f32.partialorder %v489, 0.0
        %v507 = vsel %vm506, 1, 0
        %508 = vset.pattern.permute.xlu0 0
        %509 = vperm.xlu0 %508, %v507
        %v510 = vpop.permute.xlu0 %509
        %vm511 = vcmp.eq.s32.totalorder %v510, 1
        %v512 = vsel %vm511, -1e+09, %v505
        %vm513 = vcmask 261120
        %v514 = vsel %vm513, %v512, -inf
        %v515 = vrot.slane %v514, 4
        %v516 = vmax.f32 %v514, %v515
        %v517 = vrot.slane %v516, 2
        %v518 = vmax.f32 %v516, %v517
        %v519 = vrot.slane %v518, 1
        %v520 = vmax.f32 %v518, %v519
        %521 = vset.pattern.permute.xlu0 1
        %522 = vperm.xlu0 %521, %v507
        %v523 = vpop.permute.xlu0 %522
        %vm524 = vcmp.eq.s32.totalorder %v523, 1
        %v525 = vsel %vm524, -1e+09, %v505
        %v526 = vsel %vm513, %v525, -inf
        %v527 = vrot.slane %v526, 4
        %v528 = vmax.f32 %v526, %v527
        %v529 = vrot.slane %v528, 2
        %v530 = vmax.f32 %v528, %v529
        %v531 = vrot.slane %v530, 1
        %v532 = vmax.f32 %v530, %v531
        %v533 = vpack.c.bf16 %v520, %v520
        %v534 = vpack.c.bf16 %v532, %v532
        %v535 = vlaneseq
        %v536 = vshrl.u32 %v535, 7
        %vm537 = vcmp.lt.s32.totalorder %v536, 0
        %v538 = vsub.s32 0, %v536
        %v539 = vsel %vm537, %v538, %v536
        %v540 = vshrl.u32 %v539, 3
        %v541 = vand.u32 %v539, 7
        %v542 = vsub.s32 0, %v541
        %v543 = vsel %vm537, %v542, %v541
        %vm544 = vcmp.ne.s32.totalorder %v543, 0
        %vm545 = vcmp.lt.s32.totalorder %v543, 0
        %vm546 = vmand %vm545, %vm544
        %v547 = vadd.s32 %v543, 8
        %v548 = vsel %vm546, %v547, %v543
        %vm549 = vcmp.lt.s32.totalorder %v548, 7
        %v550 = vld [vmem:[%s4] sm:$0x1]
        %v551 = vld [vmem:[%s3] sm:$0xf]
        %v552 = vld [vmem:[%s3 + $0x8] sm:$0xf]
        %v553 = vld [vmem:[%s3 + $0x10] sm:$0xf]
        %v554 = vld [vmem:[%s3 + $0x18] sm:$0xf]
        %v556 = vlaneseq
        %v557 = vshrl.u32 %v556, 7
        %v558 = vsub.s32 0, %v557
        %v559 = vrot.slane %v550, %v558
        %v565 = vunpack.c.l.b16 %v551
        %v566 = vunpack.c.l.b16 %v552
        %v567 = vunpack.c.l.b16 %v553
        %v568 = vunpack.c.l.b16 %v554
        %v569 = vpack.c.b16 %v566, %v565
        %v570 = vpack.c.b16 %v568, %v567
        %v574 = vsel %vm513, %v467, 0
        %576 = vmatprep.subr.bf16.mxu0 0
        %577 = vmatpush1.bf16.msra.mxu0 %v569
        %578 = vmatprep.subr.bf16.mxu0 0
        %579 = vmatpush1.bf16.msra.mxu0 %v570
        %580 = vmatprep.subr.bf16.mxu0 0
        %581 = vmatpush1.bf16.msra.mxu0 0
        %582 = vmatprep.subr.bf16.mxu0 0
        %583 = vmatpush1.bf16.msra.mxu0 0
        %584 = vmatprep.subr.bf16.mxu0 0
        %585 = vmatpush1.bf16.msra.mxu0 0
        %586 = vmatprep.subr.bf16.mxu0 0
        %587 = vmatpush1.bf16.msra.mxu0 0
        %588 = vmatprep.subr.bf16.mxu0 0
        %589 = vmatpush1.bf16.msra.mxu0 0
        %590 = vmatprep.subr.bf16.mxu0 0
        %591 = vmatpush1.bf16.msra.mxu0 0
        %592 = vmatprep.subr.bf16.mxu0 0
        %593 = vmatpush1.bf16.msra.mxu0 0
        %594 = vmatprep.subr.bf16.mxu0 0
        %595 = vmatpush1.bf16.msra.mxu0 0
        %596 = vmatprep.subr.bf16.mxu0 0
        %597 = vmatpush1.bf16.msra.mxu0 0
        %598 = vmatprep.subr.bf16.mxu0 0
        %599 = vmatpush1.bf16.msra.mxu0 0
        %600 = vmatprep.subr.bf16.mxu0 0
        %601 = vmatpush1.bf16.msra.mxu0 0
        %602 = vmatprep.subr.bf16.mxu0 0
        %603 = vmatpush1.bf16.msra.mxu0 0
        %604 = vmatprep.subr.bf16.mxu0 0
        %605 = vmatpush1.bf16.msra.mxu0 0
        %606 = vmatprep.subr.bf16.mxu0 0
        %607 = vmatpush1.bf16.msra.mxu0 0
        %608 = vmatprep.mubr.bf16.mxu0 0
        %609 = vmatmul.mubr.bf16.gmra.mrb[0].mxu0 %v574
        %v610 = vpop.f32.mrb[0].mxu0
        %v611 = vadd.f32 %v559, %v610
        %v612 = vpop.f32.mrb[0].mxu0
        %v613 = vpop.f32.mrb[0].mxu0
        %v614 = vpop.f32.mrb[0].mxu0
        %615 = vdwg.mxu0
        %616 = vrot.lane.b32.xlu0 %v569, 96
        %v617 = vpop.permute.xlu0 %616
        %618 = vrot.lane.b32.xlu0 %v570, 96
        %v619 = vpop.permute.xlu0 %618
        %622 = vmatprep.subr.bf16.mxu0 0
        %623 = vmatpush1.bf16.msra.mxu0 %v617
        %624 = vmatprep.subr.bf16.mxu0 0
        %625 = vmatpush1.bf16.msra.mxu0 %v619
        %626 = vmatprep.subr.bf16.mxu0 0
        %627 = vmatpush1.bf16.msra.mxu0 0
        %628 = vmatprep.subr.bf16.mxu0 0
        %629 = vmatpush1.bf16.msra.mxu0 0
        %630 = vmatprep.subr.bf16.mxu0 0
        %631 = vmatpush1.bf16.msra.mxu0 0
        %632 = vmatprep.subr.bf16.mxu0 0
        %633 = vmatpush1.bf16.msra.mxu0 0
        %634 = vmatprep.subr.bf16.mxu0 0
        %635 = vmatpush1.bf16.msra.mxu0 0
        %636 = vmatprep.subr.bf16.mxu0 0
        %637 = vmatpush1.bf16.msra.mxu0 0
        %638 = vmatprep.subr.bf16.mxu0 0
        %639 = vmatpush1.bf16.msra.mxu0 0
        %640 = vmatprep.subr.bf16.mxu0 0
        %641 = vmatpush1.bf16.msra.mxu0 0
        %642 = vmatprep.subr.bf16.mxu0 0
        %643 = vmatpush1.bf16.msra.mxu0 0
        %644 = vmatprep.subr.bf16.mxu0 0
        %645 = vmatpush1.bf16.msra.mxu0 0
        %646 = vmatprep.subr.bf16.mxu0 0
        %647 = vmatpush1.bf16.msra.mxu0 0
        %648 = vmatprep.subr.bf16.mxu0 0
        %649 = vmatpush1.bf16.msra.mxu0 0
        %650 = vmatprep.subr.bf16.mxu0 0
        %651 = vmatpush1.bf16.msra.mxu0 0
        %652 = vmatprep.subr.bf16.mxu0 0
        %653 = vmatpush1.bf16.msra.mxu0 0
        %654 = vmatprep.mubr.bf16.mxu0 0
        %655 = vmatmul.mubr.bf16.gmra.mrb[0].mxu0 %v574
        %v656 = vpop.f32.mrb[0].mxu0
        %v657 = vadd.f32 0.0, %v656
        %v658 = vpop.f32.mrb[0].mxu0
        %v659 = vpop.f32.mrb[0].mxu0
        %v660 = vpop.f32.mrb[0].mxu0
        %661 = vdwg.mxu0
        %v662 = vrot.slane %v657, 1
        %v663 = vadd.f32 %v611, %v662
        %v664 = vmax.f32 %v663, 0.0
        %v665 = vsel %vm549, 1, 0
        %vm666 = vcmp.eq.s32.totalorder %v665, 1
        %v667 = vsel %vm666, %v664, 0.0
        %v668 = vpack.c.bf16 %v667, %v667
        %669 = vrot.lane.b32.xlu0 %v569, 32
        %v670 = vpop.permute.xlu0 %669
        %671 = vrot.lane.b32.xlu0 %v570, 32
        %v672 = vpop.permute.xlu0 %671
        %675 = vrot.lane.b32.xlu0 %v559, 96
        %v676 = vpop.permute.xlu0 %675
        %678 = vmatprep.subr.bf16.mxu0 0
        %679 = vmatpush1.bf16.msra.mxu0 %v670
        %680 = vmatprep.subr.bf16.mxu0 0
        %681 = vmatpush1.bf16.msra.mxu0 %v672
        %682 = vmatprep.subr.bf16.mxu0 0
        %683 = vmatpush1.bf16.msra.mxu0 0
        %684 = vmatprep.subr.bf16.mxu0 0
        %685 = vmatpush1.bf16.msra.mxu0 0
        %686 = vmatprep.subr.bf16.mxu0 0
        %687 = vmatpush1.bf16.msra.mxu0 0
        %688 = vmatprep.subr.bf16.mxu0 0
        %689 = vmatpush1.bf16.msra.mxu0 0
        %690 = vmatprep.subr.bf16.mxu0 0
        %691 = vmatpush1.bf16.msra.mxu0 0
        %692 = vmatprep.subr.bf16.mxu0 0
        %693 = vmatpush1.bf16.msra.mxu0 0
        %694 = vmatprep.subr.bf16.mxu0 0
        %695 = vmatpush1.bf16.msra.mxu0 0
        %696 = vmatprep.subr.bf16.mxu0 0
        %697 = vmatpush1.bf16.msra.mxu0 0
        %698 = vmatprep.subr.bf16.mxu0 0
        %699 = vmatpush1.bf16.msra.mxu0 0
        %700 = vmatprep.subr.bf16.mxu0 0
        %701 = vmatpush1.bf16.msra.mxu0 0
        %702 = vmatprep.subr.bf16.mxu0 0
        %703 = vmatpush1.bf16.msra.mxu0 0
        %704 = vmatprep.subr.bf16.mxu0 0
        %705 = vmatpush1.bf16.msra.mxu0 0
        %706 = vmatprep.subr.bf16.mxu0 0
        %707 = vmatpush1.bf16.msra.mxu0 0
        %708 = vmatprep.subr.bf16.mxu0 0
        %709 = vmatpush1.bf16.msra.mxu0 0
        %710 = vmatprep.mubr.bf16.mxu0 0
        %711 = vmatmul.mubr.bf16.gmra.mrb[0].mxu0 %v574
        %v712 = vpop.f32.mrb[0].mxu0
        %v713 = vadd.f32 %v676, %v712
        %v714 = vpop.f32.mrb[0].mxu0
        %v715 = vpop.f32.mrb[0].mxu0
        %v716 = vpop.f32.mrb[0].mxu0
        %717 = vdwg.mxu0
        %718 = vrot.lane.b32.xlu0 %v569, 64
        %v719 = vpop.permute.xlu0 %718
        %720 = vrot.lane.b32.xlu0 %v570, 64
        %v721 = vpop.permute.xlu0 %720
        %724 = vmatprep.subr.bf16.mxu0 0
        %725 = vmatpush1.bf16.msra.mxu0 %v719
        %726 = vmatprep.subr.bf16.mxu0 0
        %727 = vmatpush1.bf16.msra.mxu0 %v721
        %728 = vmatprep.subr.bf16.mxu0 0
        %729 = vmatpush1.bf16.msra.mxu0 0
        %730 = vmatprep.subr.bf16.mxu0 0
        %731 = vmatpush1.bf16.msra.mxu0 0
        %732 = vmatprep.subr.bf16.mxu0 0
        %733 = vmatpush1.bf16.msra.mxu0 0
        %734 = vmatprep.subr.bf16.mxu0 0
        %735 = vmatpush1.bf16.msra.mxu0 0
        %736 = vmatprep.subr.bf16.mxu0 0
        %737 = vmatpush1.bf16.msra.mxu0 0
        %738 = vmatprep.subr.bf16.mxu0 0
        %739 = vmatpush1.bf16.msra.mxu0 0
        %740 = vmatprep.subr.bf16.mxu0 0
        %741 = vmatpush1.bf16.msra.mxu0 0
        %742 = vmatprep.subr.bf16.mxu0 0
        %743 = vmatpush1.bf16.msra.mxu0 0
        %744 = vmatprep.subr.bf16.mxu0 0
        %745 = vmatpush1.bf16.msra.mxu0 0
        %746 = vmatprep.subr.bf16.mxu0 0
        %747 = vmatpush1.bf16.msra.mxu0 0
        %748 = vmatprep.subr.bf16.mxu0 0
        %749 = vmatpush1.bf16.msra.mxu0 0
        %750 = vmatprep.subr.bf16.mxu0 0
        %751 = vmatpush1.bf16.msra.mxu0 0
        %752 = vmatprep.subr.bf16.mxu0 0
        %753 = vmatpush1.bf16.msra.mxu0 0
        %754 = vmatprep.subr.bf16.mxu0 0
        %755 = vmatpush1.bf16.msra.mxu0 0
        %756 = vmatprep.mubr.bf16.mxu0 0
        %757 = vmatmul.mubr.bf16.gmra.mrb[0].mxu0 %v574
        %v758 = vpop.f32.mrb[0].mxu0
        %v759 = vadd.f32 0.0, %v758
        %v760 = vpop.f32.mrb[0].mxu0
        %v761 = vpop.f32.mrb[0].mxu0
        %v762 = vpop.f32.mrb[0].mxu0
        %763 = vdwg.mxu0
        %vm764 = vcmp.ge.s32.totalorder %v548, 1
        %v765 = vrot.slane %v759, 7
        %v766 = vsel %vm764, 1, 0
        %vm767 = vcmp.eq.s32.totalorder %v766, 1
        %v768 = vsel %vm767, %v765, 0.0
        %v769 = vadd.f32 %v713, %v768
        %v770 = vld [vmem:[%s3 + $0x4] sm:$0xf]
        %v771 = vld [vmem:[%s3 + $0xc] sm:$0xf]
        %v772 = vld [vmem:[%s3 + $0x14] sm:$0xf]
        %v773 = vld [vmem:[%s3 + $0x1c] sm:$0xf]
        %v778 = vunpack.c.l.b16 %v770
        %v779 = vunpack.c.l.b16 %v771
        %v780 = vunpack.c.l.b16 %v772
        %v781 = vunpack.c.l.b16 %v773
        %v782 = vpack.c.b16 %v779, %v778
        %v783 = vpack.c.b16 %v781, %v780
        %786 = vmatprep.subr.bf16.mxu0 0
        %787 = vmatpush1.bf16.msra.mxu0 %v782
        %788 = vmatprep.subr.bf16.mxu0 0
        %789 = vmatpush1.bf16.msra.mxu0 %v783
        %790 = vmatprep.subr.bf16.mxu0 0
        %791 = vmatpush1.bf16.msra.mxu0 0
        %792 = vmatprep.subr.bf16.mxu0 0
        %793 = vmatpush1.bf16.msra.mxu0 0
        %794 = vmatprep.subr.bf16.mxu0 0
        %795 = vmatpush1.bf16.msra.mxu0 0
        %796 = vmatprep.subr.bf16.mxu0 0
        %797 = vmatpush1.bf16.msra.mxu0 0
        %798 = vmatprep.subr.bf16.mxu0 0
        %799 = vmatpush1.bf16.msra.mxu0 0
        %800 = vmatprep.subr.bf16.mxu0 0
        %801 = vmatpush1.bf16.msra.mxu0 0
        %802 = vmatprep.subr.bf16.mxu0 0
        %803 = vmatpush1.bf16.msra.mxu0 0
        %804 = vmatprep.subr.bf16.mxu0 0
        %805 = vmatpush1.bf16.msra.mxu0 0
        %806 = vmatprep.subr.bf16.mxu0 0
        %807 = vmatpush1.bf16.msra.mxu0 0
        %808 = vmatprep.subr.bf16.mxu0 0
        %809 = vmatpush1.bf16.msra.mxu0 0
        %810 = vmatprep.subr.bf16.mxu0 0
        %811 = vmatpush1.bf16.msra.mxu0 0
        %812 = vmatprep.subr.bf16.mxu0 0
        %813 = vmatpush1.bf16.msra.mxu0 0
        %814 = vmatprep.subr.bf16.mxu0 0
        %815 = vmatpush1.bf16.msra.mxu0 0
        %816 = vmatprep.subr.bf16.mxu0 0
        %817 = vmatpush1.bf16.msra.mxu0 0
        %818 = vmatprep.mubr.bf16.mxu0 0
        %819 = vmatmul.mubr.bf16.gmra.mrb[0].mxu0 %v574
        %v820 = vpop.f32.mrb[0].mxu0
        %v821 = vadd.f32 0.0, %v820
        %v822 = vpop.f32.mrb[0].mxu0
        %v823 = vpop.f32.mrb[0].mxu0
        %v824 = vpop.f32.mrb[0].mxu0
        %825 = vdwg.mxu0
        %v826 = vrot.slane %v821, 1
        %v827 = vsel %vm666, %v826, 0.0
        %v828 = vadd.f32 %v769, %v827
        %v829 = vmax.f32 %v828, 0.0
        %v830 = vpack.c.bf16 %v829, %v829
        %832 = vrot.lane.b32.xlu0 %v534, 32
        %v833 = vpop.permute.xlu0 %832
        %v836 = vunpack.c.l.s4 1966171168
        %v837 = vunpack.c.0.s8 %v836
        %v838 = vlaneseq
        %v839 = vshrl.u32 %v838, 7
        %v840 = vsub.s32 %v837, %v839
        %v841 = vrot.slane %v468, %v840
        %v843 = vunpack.c.l.s4 1966171168
        %v844 = vunpack.c.0.s8 %v843
        %v845 = vlaneseq
        %v846 = vshrl.u32 %v845, 7
        %v847 = vsub.s32 %v844, %v846
        %v848 = vrot.slane %v841, %v847
        %849 = vrot.lane.b32.xlu0 %v848, 64
        %v850 = vpop.permute.xlu0 %849
        %v853 = vsel %vm513, %v533, %v833
        %vm854 = vcmask 523264
        %v856 = vsel %vm854, %v853, %v850
        %v857 = vld [vmem:[%s5] sm:$0xf]
        %v858 = vld [vmem:[%s5 + $0x4] sm:$0xf]
        %v859 = vld [vmem:[%s5 + $0x8] sm:$0xf]
        %v860 = vld [vmem:[%s5 + $0xc] sm:$0xf]
        %v861 = vld [vmem:[%s5 + $0x10] sm:$0xf]
        %v862 = vld [vmem:[%s5 + $0x14] sm:$0xf]
        %v863 = vld [vmem:[%s5 + $0x18] sm:$0xf]
        %v864 = vld [vmem:[%s5 + $0x1c] sm:$0xf]
        %v865 = vld [vmem:[%s5 + $0x20] sm:$0xf]
        %v866 = vld [vmem:[%s5 + $0x24] sm:$0xf]
        %v867 = vld [vmem:[%s5 + $0x28] sm:$0xf]
        %v868 = vld [vmem:[%s5 + $0x2c] sm:$0xf]
        %v869 = vld [vmem:[%s6] sm:$0x1]
        %v882 = vunpack.c.l.b16 %v857
        %v883 = vunpack.c.l.b16 %v858
        %v884 = vunpack.c.l.b16 %v859
        %v885 = vunpack.c.l.b16 %v860
        %v886 = vunpack.c.l.b16 %v861
        %v887 = vunpack.c.l.b16 %v862
        %v888 = vunpack.c.l.b16 %v863
        %v889 = vunpack.c.l.b16 %v864
        %v890 = vunpack.c.l.b16 %v865
        %v891 = vunpack.c.l.b16 %v866
        %v892 = vunpack.c.l.b16 %v867
        %v893 = vunpack.c.l.b16 %v868
        %v894 = vpack.c.b16 %v883, %v882
        %v895 = vpack.c.b16 %v885, %v884
        %v896 = vpack.c.b16 %v887, %v886
        %v897 = vpack.c.b16 %v889, %v888
        %v898 = vpack.c.b16 %v891, %v890
        %v899 = vpack.c.b16 %v893, %v892
        %vm906 = vcmask 785408
        %v907 = vsel %vm906, %v856, 0
        %909 = vmatprep.subr.bf16.mxu0 0
        %910 = vmatpush1.bf16.msra.mxu0 %v894
        %911 = vmatprep.subr.bf16.mxu0 0
        %912 = vmatpush1.bf16.msra.mxu0 %v895
        %913 = vmatprep.subr.bf16.mxu0 0
        %914 = vmatpush1.bf16.msra.mxu0 %v896
        %915 = vmatprep.subr.bf16.mxu0 0
        %916 = vmatpush1.bf16.msra.mxu0 %v897
        %917 = vmatprep.subr.bf16.mxu0 0
        %918 = vmatpush1.bf16.msra.mxu0 %v898
        %919 = vmatprep.subr.bf16.mxu0 0
        %920 = vmatpush1.bf16.msra.mxu0 %v899
        %921 = vmatprep.subr.bf16.mxu0 0
        %922 = vmatpush1.bf16.msra.mxu0 0
        %923 = vmatprep.subr.bf16.mxu0 0
        %924 = vmatpush1.bf16.msra.mxu0 0
        %925 = vmatprep.subr.bf16.mxu0 0
        %926 = vmatpush1.bf16.msra.mxu0 0
        %927 = vmatprep.subr.bf16.mxu0 0
        %928 = vmatpush1.bf16.msra.mxu0 0
        %929 = vmatprep.subr.bf16.mxu0 0
        %930 = vmatpush1.bf16.msra.mxu0 0
        %931 = vmatprep.subr.bf16.mxu0 0
        %932 = vmatpush1.bf16.msra.mxu0 0
        %933 = vmatprep.subr.bf16.mxu0 0
        %934 = vmatpush1.bf16.msra.mxu0 0
        %935 = vmatprep.subr.bf16.mxu0 0
        %936 = vmatpush1.bf16.msra.mxu0 0
        %937 = vmatprep.subr.bf16.mxu0 0
        %938 = vmatpush1.bf16.msra.mxu0 0
        %939 = vmatprep.subr.bf16.mxu0 0
        %940 = vmatpush1.bf16.msra.mxu0 0
        %941 = vmatprep.mubr.bf16.mxu0 0
        %942 = vmatmul.mubr.bf16.gmra.mrb[0].mxu0 %v907
        %v943 = vpop.f32.mrb[0].mxu0
        %v944 = vadd.f32 %v869, %v943
        %v945 = vpop.f32.mrb[0].mxu0
        %v946 = vpop.f32.mrb[0].mxu0
        %v947 = vpop.f32.mrb[0].mxu0
        %948 = vdwg.mxu0
        %v949 = vpack.c.bf16 %v944, %v944
        %v951 = vshll.u32 %v848, 16
        %vm954 = vcmask 1040384
        %vm955 = vsmask.f32 256
        %vm956 = vmand %vm954, %vm955
        %v957 = vsel %vm956, %v949, %v951
        %vm958 = vcmask 1040384
        %v960 = vsel %vm958, %v957, %v533
        %vm962 = vcmask 1041408
        %vm963 = vsmask.f32 1280
        %vm964 = vmand %vm962, %vm963
        %v965 = vsel %vm964, %v960, %v534
        %v967 = vsel %vm513, %v965, 0
        %969 = vmatprep.subr.bf16.mxu0 0
        %970 = vmatpush1.bf16.xpose.msra.mxu0 %v967
        %971 = vmatprep.subr.bf16.mxu0 0
        %972 = vmatpush1.bf16.xpose.msra.mxu0 0
        %973 = vmatprep.subr.bf16.mxu0 0
        %974 = vmatpush1.bf16.xpose.msra.mxu0 0
        %975 = vmatprep.subr.bf16.mxu0 0
        %976 = vmatpush1.bf16.xpose.msra.mxu0 0
        %977 = vmatprep.subr.bf16.mxu0 0
        %978 = vmatpush1.bf16.xpose.msra.mxu0 0
        %979 = vmatprep.subr.bf16.mxu0 0
        %980 = vmatpush1.bf16.xpose.msra.mxu0 0
        %981 = vmatprep.subr.bf16.mxu0 0
        %982 = vmatpush1.bf16.xpose.msra.mxu0 0
        %983 = vmatprep.subr.bf16.mxu0 0
        %984 = vmatpush1.bf16.xpose.msra.mxu0 0
        %985 = vmatprep.subr.bf16.mxu0 0
        %986 = vmatpush1.bf16.xpose.msra.mxu0 0
        %987 = vmatprep.subr.bf16.mxu0 0
        %988 = vmatpush1.bf16.xpose.msra.mxu0 0
        %989 = vmatprep.subr.bf16.mxu0 0
        %990 = vmatpush1.bf16.xpose.msra.mxu0 0
        %991 = vmatprep.subr.bf16.mxu0 0
        %992 = vmatpush1.bf16.xpose.msra.mxu0 0
        %993 = vmatprep.subr.bf16.mxu0 0
        %994 = vmatpush1.bf16.xpose.msra.mxu0 0
        %995 = vmatprep.subr.bf16.mxu0 0
        %996 = vmatpush1.bf16.xpose.msra.mxu0 0
        %997 = vmatprep.subr.bf16.mxu0 0
        %998 = vmatpush1.bf16.xpose.msra.mxu0 0
        %999 = vmatprep.subr.bf16.mxu0 0
        %1000 = vmatpush1.bf16.xpose.msra.mxu0 0
        %1001 = vmatprep.mubr.bf16.mxu0 0
        %1002 = vmatmul.mubr.bf16.gmra.mrb[0].mxu0 %v574
        %v1003 = vpop.f32.mrb[0].mxu0
        %v1004 = vadd.f32 0.0, %v1003
        %v1005 = vpop.f32.mrb[0].mxu0
        %v1006 = vpop.f32.mrb[0].mxu0
        %v1007 = vpop.f32.mrb[0].mxu0
        %1008 = vdwg.mxu0
        %1009 = vxpose.xlu0.b32.start [1/16] %v1004, 128
        %1010 = vxpose.xlu0.b32.cont [2/16] 0.0, 128
        %1011 = vxpose.xlu0.b32.cont [3/16] 0.0, 128
        %1012 = vxpose.xlu0.b32.cont [4/16] 0.0, 128
        %1013 = vxpose.xlu0.b32.cont [5/16] 0.0, 128
        %1014 = vxpose.xlu0.b32.cont [6/16] 0.0, 128
        %1015 = vxpose.xlu0.b32.cont [7/16] 0.0, 128
        %1016 = vxpose.xlu0.b32.cont [8/16] 0.0, 128
        %1017 = vxpose.xlu0.b32.cont [9/16] 0.0, 128
        %1018 = vxpose.xlu0.b32.cont [10/16] 0.0, 128
        %1019 = vxpose.xlu0.b32.cont [11/16] 0.0, 128
        %1020 = vxpose.xlu0.b32.cont [12/16] 0.0, 128
        %1021 = vxpose.xlu0.b32.cont [13/16] 0.0, 128
        %1022 = vxpose.xlu0.b32.cont [14/16] 0.0, 128
        %1023 = vxpose.xlu0.b32.cont [15/16] 0.0, 128
        %1024 = vxpose.xlu0.b32.end [16/16] 0.0, 128
        %v1025 = vpop.trf.xlu0
        %v1026 = vpop.trf.xlu0
        %v1027 = vpop.trf.xlu0
        %v1028 = vpop.trf.xlu0
        %v1029 = vpop.trf.xlu0
        %v1030 = vpop.trf.xlu0
        %v1031 = vpop.trf.xlu0
        %v1032 = vpop.trf.xlu0
        %v1033 = vpop.trf.xlu0
        %v1034 = vpop.trf.xlu0
        %v1035 = vpop.trf.xlu0
        %v1036 = vpop.trf.xlu0
        %v1037 = vpop.trf.xlu0
        %v1038 = vpop.trf.xlu0
        %v1039 = vpop.trf.xlu0
        %v1040 = vpop.trf.xlu0
        %v1041 = vmul.f32 %v1025, 0.17677669
        %vm1042 = vcmp.eq.f32.partialorder %v469, 0.0
        %v1043 = vsel %vm1042, 1, 0
        %v1044 = vlaneseq
        %v1045 = vshrl.u32 %v1044, 7
        %v1046 = vsub.s32 0, %v1045
        %v1047 = vrot.slane %v1043, %v1046
        %vm1048 = vcmp.eq.s32.totalorder %v1047, 1
        %v1049 = vsel %vm1048, -1e+09, %v1041
        %vm1050 = vcmask 60416
        %v1051 = vsel %vm1050, %v1049, -inf
        %1052 = vmax.xlane.f32.xlu0 %v1051
        %v1053 = vpop.xlane.xlu0 %1052
        %v1054 = vsub.f32 %v1049, %v1053
        %v1055 = vmul.f32 %v1054, 1.442695
        %v1056 = vpow.pop %v1055
        %v1057 = vsel %vm1050, %v1056, 0.0
        %1058 = vadd.xlane.f32.xlu0 %v1057
        %v1059 = vpop.xlane.xlu0 %1058
        %v1060 = vrcp.pop %v1059
        %v1061 = vmul.f32 %v1056, %v1060
        %v1062 = vpack.c.bf16 %v1061, %v1061
        %vm1063 = vcmask 64512
        %v1065 = vsel %vm1063, %v1062, 0
        %vm1067 = vcmask 1043456
        %v1068 = vsel %vm1067, %v467, 0
        %1070 = vmatprep.subr.bf16.mxu0 0
        %1071 = vmatpush1.bf16.msra.mxu0 %v1068
        %1072 = vmatprep.subr.bf16.mxu0 0
        %1073 = vmatpush1.bf16.msra.mxu0 0
        %1074 = vmatprep.subr.bf16.mxu0 0
        %1075 = vmatpush1.bf16.msra.mxu0 0
        %1076 = vmatprep.subr.bf16.mxu0 0
        %1077 = vmatpush1.bf16.msra.mxu0 0
        %1078 = vmatprep.subr.bf16.mxu0 0
        %1079 = vmatpush1.bf16.msra.mxu0 0
        %1080 = vmatprep.subr.bf16.mxu0 0
        %1081 = vmatpush1.bf16.msra.mxu0 0
        %1082 = vmatprep.subr.bf16.mxu0 0
        %1083 = vmatpush1.bf16.msra.mxu0 0
        %1084 = vmatprep.subr.bf16.mxu0 0
        %1085 = vmatpush1.bf16.msra.mxu0 0
        %1086 = vmatprep.subr.bf16.mxu0 0
        %1087 = vmatpush1.bf16.msra.mxu0 0
        %1088 = vmatprep.subr.bf16.mxu0 0
        %1089 = vmatpush1.bf16.msra.mxu0 0
        %1090 = vmatprep.subr.bf16.mxu0 0
        %1091 = vmatpush1.bf16.msra.mxu0 0
        %1092 = vmatprep.subr.bf16.mxu0 0
        %1093 = vmatpush1.bf16.msra.mxu0 0
        %1094 = vmatprep.subr.bf16.mxu0 0
        %1095 = vmatpush1.bf16.msra.mxu0 0
        %1096 = vmatprep.subr.bf16.mxu0 0
        %1097 = vmatpush1.bf16.msra.mxu0 0
        %1098 = vmatprep.subr.bf16.mxu0 0
        %1099 = vmatpush1.bf16.msra.mxu0 0
        %1100 = vmatprep.subr.bf16.mxu0 0
        %1101 = vmatpush1.bf16.msra.mxu0 0
        %1102 = vmatprep.mubr.bf16.mxu0 0
        %1103 = vmatmul.mubr.bf16.gmra.mrb[0].mxu0 %v1065
        %v1104 = vpop.f32.mrb[0].mxu0
        %v1105 = vadd.f32 0.0, %v1104
        %v1106 = vpop.f32.mrb[0].mxu0
        %v1107 = vpop.f32.mrb[0].mxu0
        %v1108 = vpop.f32.mrb[0].mxu0
        %1109 = vdwg.mxu0
        %v1111 = vrot.slane %v1105, 1
        %1112 = vrot.lane.b32.xlu0 %v1111, 32
        %v1113 = vpop.permute.xlu0 %1112
        %v1115 = vsel %vm513, %v1105, %v1113
        %v1116 = vpack.c.bf16 %v1115, %v1115
        %v1117 = vld [vmem:[%s7] sm:$0xf]
        %v1118 = vld [vmem:[%s7 + $0x4] sm:$0xf]
        %v1119 = vld [vmem:[%s7 + $0x8] sm:$0xf]
        %v1120 = vld [vmem:[%s7 + $0xc] sm:$0xf]
        %v1121 = vld [vmem:[%s7 + $0x10] sm:$0xf]
        %v1122 = vld [vmem:[%s7 + $0x14] sm:$0xf]
        %v1123 = vld [vmem:[%s7 + $0x18] sm:$0xf]
        %v1124 = vld [vmem:[%s7 + $0x1c] sm:$0xf]
        %v1125 = vld [vmem:[%s8] sm:$0x1]
        %v1127 = vrot.slane %v1116, 1
        %v1136 = vunpack.c.l.b16 %v1117
        %v1137 = vunpack.c.l.b16 %v1118
        %v1138 = vunpack.c.l.b16 %v1119
        %v1139 = vunpack.c.l.b16 %v1120
        %v1140 = vunpack.c.l.b16 %v1121
        %v1141 = vunpack.c.l.b16 %v1122
        %v1142 = vunpack.c.l.b16 %v1123
        %v1143 = vunpack.c.l.b16 %v1124
        %v1144 = vpack.c.b16 %v1137, %v1136
        %v1145 = vpack.c.b16 %v1139, %v1138
        %v1146 = vpack.c.b16 %v1141, %v1140
        %v1147 = vpack.c.b16 %v1143, %v1142
        %v1153 = vsel %vm854, %v1127, 0
        %1155 = vmatprep.subr.bf16.mxu0 0
        %1156 = vmatpush1.bf16.msra.mxu0 %v1144
        %1157 = vmatprep.subr.bf16.mxu0 0
        %1158 = vmatpush1.bf16.msra.mxu0 %v1145
        %1159 = vmatprep.subr.bf16.mxu0 0
        %1160 = vmatpush1.bf16.msra.mxu0 %v1146
        %1161 = vmatprep.subr.bf16.mxu0 0
        %1162 = vmatpush1.bf16.msra.mxu0 %v1147
        %1163 = vmatprep.subr.bf16.mxu0 0
        %1164 = vmatpush1.bf16.msra.mxu0 0
        %1165 = vmatprep.subr.bf16.mxu0 0
        %1166 = vmatpush1.bf16.msra.mxu0 0
        %1167 = vmatprep.subr.bf16.mxu0 0
        %1168 = vmatpush1.bf16.msra.mxu0 0
        %1169 = vmatprep.subr.bf16.mxu0 0
        %1170 = vmatpush1.bf16.msra.mxu0 0
        %1171 = vmatprep.subr.bf16.mxu0 0
        %1172 = vmatpush1.bf16.msra.mxu0 0
        %1173 = vmatprep.subr.bf16.mxu0 0
        %1174 = vmatpush1.bf16.msra.mxu0 0
        %1175 = vmatprep.subr.bf16.mxu0 0
        %1176 = vmatpush1.bf16.msra.mxu0 0
        %1177 = vmatprep.subr.bf16.mxu0 0
        %1178 = vmatpush1.bf16.msra.mxu0 0
        %1179 = vmatprep.subr.bf16.mxu0 0
        %1180 = vmatpush1.bf16.msra.mxu0 0
        %1181 = vmatprep.subr.bf16.mxu0 0
        %1182 = vmatpush1.bf16.msra.mxu0 0
        %1183 = vmatprep.subr.bf16.mxu0 0
        %1184 = vmatpush1.bf16.msra.mxu0 0
        %1185 = vmatprep.subr.bf16.mxu0 0
        %1186 = vmatpush1.bf16.msra.mxu0 0
        %1187 = vmatprep.mubr.bf16.mxu0 0
        %1188 = vmatmul.mubr.bf16.gmra.mrb[0].mxu0 %v1153
        %v1189 = vpop.f32.mrb[0].mxu0
        %v1190 = vadd.f32 %v1125, %v1189
        %v1191 = vpop.f32.mrb[0].mxu0
        %v1192 = vpop.f32.mrb[0].mxu0
        %v1193 = vpop.f32.mrb[0].mxu0
        %1194 = vdwg.mxu0
        %v1195 = vpack.c.bf16 %v1190, %v1190
        %v1197 = vsel %vm513, %v1195, 0
        %1199 = vmatprep.subr.bf16.mxu0 0
        %1200 = vmatpush1.bf16.xpose.msra.mxu0 %v1197
        %1201 = vmatprep.subr.bf16.mxu0 0
        %1202 = vmatpush1.bf16.xpose.msra.mxu0 0
        %1203 = vmatprep.subr.bf16.mxu0 0
        %1204 = vmatpush1.bf16.xpose.msra.mxu0 0
        %1205 = vmatprep.subr.bf16.mxu0 0
        %1206 = vmatpush1.bf16.xpose.msra.mxu0 0
        %1207 = vmatprep.subr.bf16.mxu0 0
        %1208 = vmatpush1.bf16.xpose.msra.mxu0 0
        %1209 = vmatprep.subr.bf16.mxu0 0
        %1210 = vmatpush1.bf16.xpose.msra.mxu0 0
        %1211 = vmatprep.subr.bf16.mxu0 0
        %1212 = vmatpush1.bf16.xpose.msra.mxu0 0
        %1213 = vmatprep.subr.bf16.mxu0 0
        %1214 = vmatpush1.bf16.xpose.msra.mxu0 0
        %1215 = vmatprep.subr.bf16.mxu0 0
        %1216 = vmatpush1.bf16.xpose.msra.mxu0 0
        %1217 = vmatprep.subr.bf16.mxu0 0
        %1218 = vmatpush1.bf16.xpose.msra.mxu0 0
        %1219 = vmatprep.subr.bf16.mxu0 0
        %1220 = vmatpush1.bf16.xpose.msra.mxu0 0
        %1221 = vmatprep.subr.bf16.mxu0 0
        %1222 = vmatpush1.bf16.xpose.msra.mxu0 0
        %1223 = vmatprep.subr.bf16.mxu0 0
        %1224 = vmatpush1.bf16.xpose.msra.mxu0 0
        %1225 = vmatprep.subr.bf16.mxu0 0
        %1226 = vmatpush1.bf16.xpose.msra.mxu0 0
        %1227 = vmatprep.subr.bf16.mxu0 0
        %1228 = vmatpush1.bf16.xpose.msra.mxu0 0
        %1229 = vmatprep.subr.bf16.mxu0 0
        %1230 = vmatpush1.bf16.xpose.msra.mxu0 0
        %1231 = vmatprep.mubr.bf16.mxu0 0
        %1232 = vmatmul.mubr.bf16.gmra.mrb[0].mxu0 %v574
        %v1233 = vpop.f32.mrb[0].mxu0
        %v1234 = vadd.f32 0.0, %v1233
        %v1235 = vpop.f32.mrb[0].mxu0
        %v1236 = vpop.f32.mrb[0].mxu0
        %v1237 = vpop.f32.mrb[0].mxu0
        %1238 = vdwg.mxu0
        %1239 = vxpose.xlu0.b32.start [1/16] %v1234, 128
        %1240 = vxpose.xlu0.b32.cont [2/16] 0.0, 128
        %1241 = vxpose.xlu0.b32.cont [3/16] 0.0, 128
        %1242 = vxpose.xlu0.b32.cont [4/16] 0.0, 128
        %1243 = vxpose.xlu0.b32.cont [5/16] 0.0, 128
        %1244 = vxpose.xlu0.b32.cont [6/16] 0.0, 128
        %1245 = vxpose.xlu0.b32.cont [7/16] 0.0, 128
        %1246 = vxpose.xlu0.b32.cont [8/16] 0.0, 128
        %1247 = vxpose.xlu0.b32.cont [9/16] 0.0, 128
        %1248 = vxpose.xlu0.b32.cont [10/16] 0.0, 128
        %1249 = vxpose.xlu0.b32.cont [11/16] 0.0, 128
        %1250 = vxpose.xlu0.b32.cont [12/16] 0.0, 128
        %1251 = vxpose.xlu0.b32.cont [13/16] 0.0, 128
        %1252 = vxpose.xlu0.b32.cont [14/16] 0.0, 128
        %1253 = vxpose.xlu0.b32.cont [15/16] 0.0, 128
        %1254 = vxpose.xlu0.b32.end [16/16] 0.0, 128
        %v1255 = vpop.trf.xlu0
        %v1256 = vpop.trf.xlu0
        %v1257 = vpop.trf.xlu0
        %v1258 = vpop.trf.xlu0
        %v1259 = vpop.trf.xlu0
        %v1260 = vpop.trf.xlu0
        %v1261 = vpop.trf.xlu0
        %v1262 = vpop.trf.xlu0
        %v1263 = vpop.trf.xlu0
        %v1264 = vpop.trf.xlu0
        %v1265 = vpop.trf.xlu0
        %v1266 = vpop.trf.xlu0
        %v1267 = vpop.trf.xlu0
        %v1268 = vpop.trf.xlu0
        %v1269 = vpop.trf.xlu0
        %v1270 = vpop.trf.xlu0
        %v1271 = vmul.f32 %v1255, 0.17677669
        %v1272 = vsel %vm1042, -1e+09, %v1271
        %vm1273 = vcmask 57344
        %v1274 = vsel %vm1273, %v1272, -inf
        %1275 = vmax.xlane.f32.xlu0 %v1274
        %v1276 = vpop.xlane.xlu0 %1275
        %v1277 = vsub.f32 %v1272, %v1276
        %v1278 = vmul.f32 %v1277, 1.442695
        %v1279 = vpow.pop %v1278
        %v1280 = vsel %vm1273, %v1279, 0.0
        %1281 = vadd.xlane.f32.xlu0 %v1280
        %v1282 = vpop.xlane.xlu0 %1281
        %v1283 = vrcp.pop %v1282
        %v1284 = vmul.f32 %v1279, %v1283
        %v1285 = vpack.c.bf16 %v1284, %v1284
        %v1287 = vsel %vm1063, %v1285, 0
        %1289 = vmatprep.subr.bf16.mxu0 0
        %1290 = vmatpush1.bf16.msra.mxu0 %v1068
        %1291 = vmatprep.subr.bf16.mxu0 0
        %1292 = vmatpush1.bf16.msra.mxu0 0
        %1293 = vmatprep.subr.bf16.mxu0 0
        %1294 = vmatpush1.bf16.msra.mxu0 0
        %1295 = vmatprep.subr.bf16.mxu0 0
        %1296 = vmatpush1.bf16.msra.mxu0 0
        %1297 = vmatprep.subr.bf16.mxu0 0
        %1298 = vmatpush1.bf16.msra.mxu0 0
        %1299 = vmatprep.subr.bf16.mxu0 0
        %1300 = vmatpush1.bf16.msra.mxu0 0
        %1301 = vmatprep.subr.bf16.mxu0 0
        %1302 = vmatpush1.bf16.msra.mxu0 0
        %1303 = vmatprep.subr.bf16.mxu0 0
        %1304 = vmatpush1.bf16.msra.mxu0 0
        %1305 = vmatprep.subr.bf16.mxu0 0
        %1306 = vmatpush1.bf16.msra.mxu0 0
        %1307 = vmatprep.subr.bf16.mxu0 0
        %1308 = vmatpush1.bf16.msra.mxu0 0
        %1309 = vmatprep.subr.bf16.mxu0 0
        %1310 = vmatpush1.bf16.msra.mxu0 0
        %1311 = vmatprep.subr.bf16.mxu0 0
        %1312 = vmatpush1.bf16.msra.mxu0 0
        %1313 = vmatprep.subr.bf16.mxu0 0
        %1314 = vmatpush1.bf16.msra.mxu0 0
        %1315 = vmatprep.subr.bf16.mxu0 0
        %1316 = vmatpush1.bf16.msra.mxu0 0
        %1317 = vmatprep.subr.bf16.mxu0 0
        %1318 = vmatpush1.bf16.msra.mxu0 0
        %1319 = vmatprep.subr.bf16.mxu0 0
        %1320 = vmatpush1.bf16.msra.mxu0 0
        %1321 = vmatprep.mubr.bf16.mxu0 0
        %1322 = vmatmul.mubr.bf16.gmra.mrb[0].mxu0 %v1287
        %v1323 = vpop.f32.mrb[0].mxu0
        %v1324 = vadd.f32 0.0, %v1323
        %v1325 = vpop.f32.mrb[0].mxu0
        %v1326 = vpop.f32.mrb[0].mxu0
        %v1327 = vpop.f32.mrb[0].mxu0
        %1328 = vdwg.mxu0
        %v1330 = vsel %vm513, %v668, 0
        %1332 = vmatprep.subr.bf16.mxu0 0
        %1333 = vmatpush1.bf16.xpose.msra.mxu0 %v1197
        %1334 = vmatprep.subr.bf16.mxu0 0
        %1335 = vmatpush1.bf16.xpose.msra.mxu0 0
        %1336 = vmatprep.subr.bf16.mxu0 0
        %1337 = vmatpush1.bf16.xpose.msra.mxu0 0
        %1338 = vmatprep.subr.bf16.mxu0 0
        %1339 = vmatpush1.bf16.xpose.msra.mxu0 0
        %1340 = vmatprep.subr.bf16.mxu0 0
        %1341 = vmatpush1.bf16.xpose.msra.mxu0 0
        %1342 = vmatprep.subr.bf16.mxu0 0
        %1343 = vmatpush1.bf16.xpose.msra.mxu0 0
        %1344 = vmatprep.subr.bf16.mxu0 0
        %1345 = vmatpush1.bf16.xpose.msra.mxu0 0
        %1346 = vmatprep.subr.bf16.mxu0 0
        %1347 = vmatpush1.bf16.xpose.msra.mxu0 0
        %1348 = vmatprep.subr.bf16.mxu0 0
        %1349 = vmatpush1.bf16.xpose.msra.mxu0 0
        %1350 = vmatprep.subr.bf16.mxu0 0
        %1351 = vmatpush1.bf16.xpose.msra.mxu0 0
        %1352 = vmatprep.subr.bf16.mxu0 0
        %1353 = vmatpush1.bf16.xpose.msra.mxu0 0
        %1354 = vmatprep.subr.bf16.mxu0 0
        %1355 = vmatpush1.bf16.xpose.msra.mxu0 0
        %1356 = vmatprep.subr.bf16.mxu0 0
        %1357 = vmatpush1.bf16.xpose.msra.mxu0 0
        %1358 = vmatprep.subr.bf16.mxu0 0
        %1359 = vmatpush1.bf16.xpose.msra.mxu0 0
        %1360 = vmatprep.subr.bf16.mxu0 0
        %1361 = vmatpush1.bf16.xpose.msra.mxu0 0
        %1362 = vmatprep.subr.bf16.mxu0 0
        %1363 = vmatpush1.bf16.xpose.msra.mxu0 0
        %1364 = vmatprep.mubr.bf16.mxu0 0
        %1365 = vmatmul.mubr.bf16.gmra.mrb[0].mxu0 %v1330
        %v1366 = vpop.f32.mrb[0].mxu0
        %v1367 = vadd.f32 0.0, %v1366
        %v1368 = vpop.f32.mrb[0].mxu0
        %v1369 = vpop.f32.mrb[0].mxu0
        %v1370 = vpop.f32.mrb[0].mxu0
        %1371 = vdwg.mxu0
        %1372 = vxpose.xlu0.b32.start [1/16] %v1367, 128
        %1373 = vxpose.xlu0.b32.cont [2/16] 0.0, 128
        %1374 = vxpose.xlu0.b32.cont [3/16] 0.0, 128
        %1375 = vxpose.xlu0.b32.cont [4/16] 0.0, 128
        %1376 = vxpose.xlu0.b32.cont [5/16] 0.0, 128
        %1377 = vxpose.xlu0.b32.cont [6/16] 0.0, 128
        %1378 = vxpose.xlu0.b32.cont [7/16] 0.0, 128
        %1379 = vxpose.xlu0.b32.cont [8/16] 0.0, 128
        %1380 = vxpose.xlu0.b32.cont [9/16] 0.0, 128
        %1381 = vxpose.xlu0.b32.cont [10/16] 0.0, 128
        %1382 = vxpose.xlu0.b32.cont [11/16] 0.0, 128
        %1383 = vxpose.xlu0.b32.cont [12/16] 0.0, 128
        %1384 = vxpose.xlu0.b32.cont [13/16] 0.0, 128
        %1385 = vxpose.xlu0.b32.cont [14/16] 0.0, 128
        %1386 = vxpose.xlu0.b32.cont [15/16] 0.0, 128
        %1387 = vxpose.xlu0.b32.end [16/16] 0.0, 128
        %v1388 = vpop.trf.xlu0
        %v1389 = vpop.trf.xlu0
        %v1390 = vpop.trf.xlu0
        %v1391 = vpop.trf.xlu0
        %v1392 = vpop.trf.xlu0
        %v1393 = vpop.trf.xlu0
        %v1394 = vpop.trf.xlu0
        %v1395 = vpop.trf.xlu0
        %v1396 = vpop.trf.xlu0
        %v1397 = vpop.trf.xlu0
        %v1398 = vpop.trf.xlu0
        %v1399 = vpop.trf.xlu0
        %v1400 = vpop.trf.xlu0
        %v1401 = vpop.trf.xlu0
        %v1402 = vpop.trf.xlu0
        %v1403 = vpop.trf.xlu0
        %v1404 = vmul.f32 %v1388, 0.17677669
        %v1405 = vsel %vm1042, -1e+09, %v1404
        %v1406 = vsel %vm1273, %v1405, -inf
        %1407 = vmax.xlane.f32.xlu0 %v1406
        %v1408 = vpop.xlane.xlu0 %1407
        %v1409 = vsub.f32 %v1405, %v1408
        %v1410 = vmul.f32 %v1409, 1.442695
        %v1411 = vpow.pop %v1410
        %v1412 = vsel %vm1273, %v1411, 0.0
        %1413 = vadd.xlane.f32.xlu0 %v1412
        %v1414 = vpop.xlane.xlu0 %1413
        %v1415 = vrcp.pop %v1414
        %v1416 = vmul.f32 %v1411, %v1415
        %v1417 = vpack.c.bf16 %v1416, %v1416
        %v1419 = vsel %vm1063, %v1417, 0
        %v1421 = vsel %vm1067, %v668, 0
        %1423 = vmatprep.subr.bf16.mxu0 0
        %1424 = vmatpush1.bf16.msra.mxu0 %v1421
        %1425 = vmatprep.subr.bf16.mxu0 0
        %1426 = vmatpush1.bf16.msra.mxu0 0
        %1427 = vmatprep.subr.bf16.mxu0 0
        %1428 = vmatpush1.bf16.msra.mxu0 0
        %1429 = vmatprep.subr.bf16.mxu0 0
        %1430 = vmatpush1.bf16.msra.mxu0 0
        %1431 = vmatprep.subr.bf16.mxu0 0
        %1432 = vmatpush1.bf16.msra.mxu0 0
        %1433 = vmatprep.subr.bf16.mxu0 0
        %1434 = vmatpush1.bf16.msra.mxu0 0
        %1435 = vmatprep.subr.bf16.mxu0 0
        %1436 = vmatpush1.bf16.msra.mxu0 0
        %1437 = vmatprep.subr.bf16.mxu0 0
        %1438 = vmatpush1.bf16.msra.mxu0 0
        %1439 = vmatprep.subr.bf16.mxu0 0
        %1440 = vmatpush1.bf16.msra.mxu0 0
        %1441 = vmatprep.subr.bf16.mxu0 0
        %1442 = vmatpush1.bf16.msra.mxu0 0
        %1443 = vmatprep.subr.bf16.mxu0 0
        %1444 = vmatpush1.bf16.msra.mxu0 0
        %1445 = vmatprep.subr.bf16.mxu0 0
        %1446 = vmatpush1.bf16.msra.mxu0 0
        %1447 = vmatprep.subr.bf16.mxu0 0
        %1448 = vmatpush1.bf16.msra.mxu0 0
        %1449 = vmatprep.subr.bf16.mxu0 0
        %1450 = vmatpush1.bf16.msra.mxu0 0
        %1451 = vmatprep.subr.bf16.mxu0 0
        %1452 = vmatpush1.bf16.msra.mxu0 0
        %1453 = vmatprep.subr.bf16.mxu0 0
        %1454 = vmatpush1.bf16.msra.mxu0 0
        %1455 = vmatprep.mubr.bf16.mxu0 0
        %1456 = vmatmul.mubr.bf16.gmra.mrb[0].mxu0 %v1419
        %v1457 = vpop.f32.mrb[0].mxu0
        %v1458 = vadd.f32 0.0, %v1457
        %v1459 = vpop.f32.mrb[0].mxu0
        %v1460 = vpop.f32.mrb[0].mxu0
        %v1461 = vpop.f32.mrb[0].mxu0
        %1462 = vdwg.mxu0
        %v1464 = vsel %vm513, %v830, 0
        %1466 = vmatprep.subr.bf16.mxu0 0
        %1467 = vmatpush1.bf16.xpose.msra.mxu0 %v1197
        %1468 = vmatprep.subr.bf16.mxu0 0
        %1469 = vmatpush1.bf16.xpose.msra.mxu0 0
        %1470 = vmatprep.subr.bf16.mxu0 0
        %1471 = vmatpush1.bf16.xpose.msra.mxu0 0
        %1472 = vmatprep.subr.bf16.mxu0 0
        %1473 = vmatpush1.bf16.xpose.msra.mxu0 0
        %1474 = vmatprep.subr.bf16.mxu0 0
        %1475 = vmatpush1.bf16.xpose.msra.mxu0 0
        %1476 = vmatprep.subr.bf16.mxu0 0
        %1477 = vmatpush1.bf16.xpose.msra.mxu0 0
        %1478 = vmatprep.subr.bf16.mxu0 0
        %1479 = vmatpush1.bf16.xpose.msra.mxu0 0
        %1480 = vmatprep.subr.bf16.mxu0 0
        %1481 = vmatpush1.bf16.xpose.msra.mxu0 0
        %1482 = vmatprep.subr.bf16.mxu0 0
        %1483 = vmatpush1.bf16.xpose.msra.mxu0 0
        %1484 = vmatprep.subr.bf16.mxu0 0
        %1485 = vmatpush1.bf16.xpose.msra.mxu0 0
        %1486 = vmatprep.subr.bf16.mxu0 0
        %1487 = vmatpush1.bf16.xpose.msra.mxu0 0
        %1488 = vmatprep.subr.bf16.mxu0 0
        %1489 = vmatpush1.bf16.xpose.msra.mxu0 0
        %1490 = vmatprep.subr.bf16.mxu0 0
        %1491 = vmatpush1.bf16.xpose.msra.mxu0 0
        %1492 = vmatprep.subr.bf16.mxu0 0
        %1493 = vmatpush1.bf16.xpose.msra.mxu0 0
        %1494 = vmatprep.subr.bf16.mxu0 0
        %1495 = vmatpush1.bf16.xpose.msra.mxu0 0
        %1496 = vmatprep.subr.bf16.mxu0 0
        %1497 = vmatpush1.bf16.xpose.msra.mxu0 0
        %1498 = vmatprep.mubr.bf16.mxu0 0
        %1499 = vmatmul.mubr.bf16.gmra.mrb[0].mxu0 %v1464
        %v1500 = vpop.f32.mrb[0].mxu0
        %v1501 = vadd.f32 0.0, %v1500
        %v1502 = vpop.f32.mrb[0].mxu0
        %v1503 = vpop.f32.mrb[0].mxu0
        %v1504 = vpop.f32.mrb[0].mxu0
        %1505 = vdwg.mxu0
        %1506 = vxpose.xlu0.b32.start [1/16] %v1501, 128
        %1507 = vxpose.xlu0.b32.cont [2/16] 0.0, 128
        %1508 = vxpose.xlu0.b32.cont [3/16] 0.0, 128
        %1509 = vxpose.xlu0.b32.cont [4/16] 0.0, 128
        %1510 = vxpose.xlu0.b32.cont [5/16] 0.0, 128
        %1511 = vxpose.xlu0.b32.cont [6/16] 0.0, 128
        %1512 = vxpose.xlu0.b32.cont [7/16] 0.0, 128
        %1513 = vxpose.xlu0.b32.cont [8/16] 0.0, 128
        %1514 = vxpose.xlu0.b32.cont [9/16] 0.0, 128
        %1515 = vxpose.xlu0.b32.cont [10/16] 0.0, 128
        %1516 = vxpose.xlu0.b32.cont [11/16] 0.0, 128
        %1517 = vxpose.xlu0.b32.cont [12/16] 0.0, 128
        %1518 = vxpose.xlu0.b32.cont [13/16] 0.0, 128
        %1519 = vxpose.xlu0.b32.cont [14/16] 0.0, 128
        %1520 = vxpose.xlu0.b32.cont [15/16] 0.0, 128
        %1521 = vxpose.xlu0.b32.end [16/16] 0.0, 128
        %v1522 = vpop.trf.xlu0
        %v1523 = vpop.trf.xlu0
        %v1524 = vpop.trf.xlu0
        %v1525 = vpop.trf.xlu0
        %v1526 = vpop.trf.xlu0
        %v1527 = vpop.trf.xlu0
        %v1528 = vpop.trf.xlu0
        %v1529 = vpop.trf.xlu0
        %v1530 = vpop.trf.xlu0
        %v1531 = vpop.trf.xlu0
        %v1532 = vpop.trf.xlu0
        %v1533 = vpop.trf.xlu0
        %v1534 = vpop.trf.xlu0
        %v1535 = vpop.trf.xlu0
        %v1536 = vpop.trf.xlu0
        %v1537 = vpop.trf.xlu0
        %v1538 = vmul.f32 %v1522, 0.17677669
        %v1539 = vsel %vm1042, -1e+09, %v1538
        %v1540 = vsel %vm1273, %v1539, -inf
        %1541 = vmax.xlane.f32.xlu0 %v1540
        %v1542 = vpop.xlane.xlu0 %1541
        %v1543 = vsub.f32 %v1539, %v1542
        %v1544 = vmul.f32 %v1543, 1.442695
        %v1545 = vpow.pop %v1544
        %v1546 = vsel %vm1273, %v1545, 0.0
        %1547 = vadd.xlane.f32.xlu0 %v1546
        %v1548 = vpop.xlane.xlu0 %1547
        %v1549 = vrcp.pop %v1548
        %v1550 = vmul.f32 %v1545, %v1549
        %v1551 = vpack.c.bf16 %v1550, %v1550
        %v1553 = vsel %vm1063, %v1551, 0
        %v1555 = vsel %vm1067, %v830, 0
        %1557 = vmatprep.subr.bf16.mxu0 0
        %1558 = vmatpush1.bf16.msra.mxu0 %v1555
        %1559 = vmatprep.subr.bf16.mxu0 0
        %1560 = vmatpush1.bf16.msra.mxu0 0
        %1561 = vmatprep.subr.bf16.mxu0 0
        %1562 = vmatpush1.bf16.msra.mxu0 0
        %1563 = vmatprep.subr.bf16.mxu0 0
        %1564 = vmatpush1.bf16.msra.mxu0 0
        %1565 = vmatprep.subr.bf16.mxu0 0
        %1566 = vmatpush1.bf16.msra.mxu0 0
        %1567 = vmatprep.subr.bf16.mxu0 0
        %1568 = vmatpush1.bf16.msra.mxu0 0
        %1569 = vmatprep.subr.bf16.mxu0 0
        %1570 = vmatpush1.bf16.msra.mxu0 0
        %1571 = vmatprep.subr.bf16.mxu0 0
        %1572 = vmatpush1.bf16.msra.mxu0 0
        %1573 = vmatprep.subr.bf16.mxu0 0
        %1574 = vmatpush1.bf16.msra.mxu0 0
        %1575 = vmatprep.subr.bf16.mxu0 0
        %1576 = vmatpush1.bf16.msra.mxu0 0
        %1577 = vmatprep.subr.bf16.mxu0 0
        %1578 = vmatpush1.bf16.msra.mxu0 0
        %1579 = vmatprep.subr.bf16.mxu0 0
        %1580 = vmatpush1.bf16.msra.mxu0 0
        %1581 = vmatprep.subr.bf16.mxu0 0
        %1582 = vmatpush1.bf16.msra.mxu0 0
        %1583 = vmatprep.subr.bf16.mxu0 0
        %1584 = vmatpush1.bf16.msra.mxu0 0
        %1585 = vmatprep.subr.bf16.mxu0 0
        %1586 = vmatpush1.bf16.msra.mxu0 0
        %1587 = vmatprep.subr.bf16.mxu0 0
        %1588 = vmatpush1.bf16.msra.mxu0 0
        %1589 = vmatprep.mubr.bf16.mxu0 0
        %1590 = vmatmul.mubr.bf16.gmra.mrb[0].mxu0 %v1553
        %v1591 = vpop.f32.mrb[0].mxu0
        %v1592 = vadd.f32 0.0, %v1591
        %v1593 = vpop.f32.mrb[0].mxu0
        %v1594 = vpop.f32.mrb[0].mxu0
        %v1595 = vpop.f32.mrb[0].mxu0
        %1596 = vdwg.mxu0
        %v1597 = vpack.c.bf16 %v1105, %v1105
        %v1598 = vpack.c.bf16 %v1324, %v1324
        %v1599 = vpack.c.bf16 %v1458, %v1458
        %v1600 = vpack.c.bf16 %v1592, %v1592
        %1602 = vrot.lane.b32.xlu0 %v1597, 32
        %v1603 = vpop.permute.xlu0 %1602
        %v1605 = vshrl.u32 %v1597, 16
        %1607 = vrot.lane.b32.xlu0 %v1605, 64
        %v1608 = vpop.permute.xlu0 %1607
        %v1609 = vrot.slane %v1597, 1
        %1610 = vrot.lane.b32.xlu0 %v1609, 96
        %v1611 = vpop.permute.xlu0 %1610
        %v1612 = vrot.slane %v1605, 1
        %1614 = vrot.lane.b32.xlu0 %v1598, 32
        %v1615 = vpop.permute.xlu0 %1614
        %1617 = vrot.lane.b32.xlu0 %v1599, 64
        %v1618 = vpop.permute.xlu0 %1617
        %1620 = vrot.lane.b32.xlu0 %v1600, 96
        %v1621 = vpop.permute.xlu0 %1620
        %v1624 = vsel %vm513, %v468, %v1603
        %v1626 = vsel %vm854, %v1624, %v1608
        %v1628 = vsel %vm906, %v1626, %v1611
        %v1632 = vsel %vm513, %v1612, %v1615
        %v1634 = vsel %vm854, %v1632, %v1618
        %v1636 = vsel %vm906, %v1634, %v1621
        %v1638 = vld [vmem:[%s9] sm:$0xf]
        %v1639 = vld [vmem:[%s9 + $0x4] sm:$0xf]
        %v1640 = vld [vmem:[%s9 + $0x8] sm:$0xf]
        %v1641 = vld [vmem:[%s9 + $0xc] sm:$0xf]
        %v1642 = vld [vmem:[%s9 + $0x10] sm:$0xf]
        %v1643 = vld [vmem:[%s9 + $0x14] sm:$0xf]
        %v1644 = vld [vmem:[%s9 + $0x18] sm:$0xf]
        %v1645 = vld [vmem:[%s9 + $0x1c] sm:$0xf]
        %v1646 = vld [vmem:[%s9 + $0x20] sm:$0xf]
        %v1647 = vld [vmem:[%s9 + $0x24] sm:$0xf]
        %v1648 = vld [vmem:[%s9 + $0x28] sm:$0xf]
        %v1649 = vld [vmem:[%s9 + $0x2c] sm:$0xf]
        %v1650 = vld [vmem:[%s9 + $0x30] sm:$0xf]
        %v1651 = vld [vmem:[%s9 + $0x34] sm:$0xf]
        %v1652 = vld [vmem:[%s9 + $0x38] sm:$0xf]
        %v1653 = vld [vmem:[%s9 + $0x3c] sm:$0xf]
        %v1654 = vld [vmem:[%s9 + $0x40] sm:$0xf]
        %v1655 = vld [vmem:[%s9 + $0x44] sm:$0xf]
        %v1656 = vld [vmem:[%s9 + $0x48] sm:$0xf]
        %v1657 = vld [vmem:[%s9 + $0x4c] sm:$0xf]
        %v1658 = vld [vmem:[%s9 + $0x50] sm:$0xf]
        %v1659 = vld [vmem:[%s9 + $0x54] sm:$0xf]
        %v1660 = vld [vmem:[%s9 + $0x58] sm:$0xf]
        %v1661 = vld [vmem:[%s9 + $0x5c] sm:$0xf]
        %v1662 = vld [vmem:[%s9 + $0x60] sm:$0xf]
        %v1663 = vld [vmem:[%s9 + $0x64] sm:$0xf]
        %v1664 = vld [vmem:[%s9 + $0x68] sm:$0xf]
        %v1665 = vld [vmem:[%s9 + $0x6c] sm:$0xf]
        %v1666 = vld [vmem:[%s9 + $0x70] sm:$0xf]
        %v1667 = vld [vmem:[%s9 + $0x74] sm:$0xf]
        %v1668 = vld [vmem:[%s9 + $0x78] sm:$0xf]
        %v1669 = vld [vmem:[%s9 + $0x7c] sm:$0xf]
        %v1670 = vld [vmem:[%s10] sm:$0x1]
        %v1703 = vunpack.c.l.b16 %v1638
        %v1704 = vunpack.c.l.b16 %v1639
        %v1705 = vunpack.c.l.b16 %v1640
        %v1706 = vunpack.c.l.b16 %v1641
        %v1707 = vunpack.c.l.b16 %v1642
        %v1708 = vunpack.c.l.b16 %v1643
        %v1709 = vunpack.c.l.b16 %v1644
        %v1710 = vunpack.c.l.b16 %v1645
        %v1711 = vunpack.c.l.b16 %v1646
        %v1712 = vunpack.c.l.b16 %v1647
        %v1713 = vunpack.c.l.b16 %v1648
        %v1714 = vunpack.c.l.b16 %v1649
        %v1715 = vunpack.c.l.b16 %v1650
        %v1716 = vunpack.c.l.b16 %v1651
        %v1717 = vunpack.c.l.b16 %v1652
        %v1718 = vunpack.c.l.b16 %v1653
        %v1719 = vunpack.c.l.b16 %v1654
        %v1720 = vunpack.c.l.b16 %v1655
        %v1721 = vunpack.c.l.b16 %v1656
        %v1722 = vunpack.c.l.b16 %v1657
        %v1723 = vunpack.c.l.b16 %v1658
        %v1724 = vunpack.c.l.b16 %v1659
        %v1725 = vunpack.c.l.b16 %v1660
        %v1726 = vunpack.c.l.b16 %v1661
        %v1727 = vunpack.c.l.b16 %v1662
        %v1728 = vunpack.c.l.b16 %v1663
        %v1729 = vunpack.c.l.b16 %v1664
        %v1730 = vunpack.c.l.b16 %v1665
        %v1731 = vunpack.c.l.b16 %v1666
        %v1732 = vunpack.c.l.b16 %v1667
        %v1733 = vunpack.c.l.b16 %v1668
        %v1734 = vunpack.c.l.b16 %v1669
        %v1735 = vpack.c.b16 %v1704, %v1703
        %v1736 = vpack.c.b16 %v1706, %v1705
        %v1737 = vpack.c.b16 %v1708, %v1707
        %v1738 = vpack.c.b16 %v1710, %v1709
        %v1739 = vpack.c.b16 %v1712, %v1711
        %v1740 = vpack.c.b16 %v1714, %v1713
        %v1741 = vpack.c.b16 %v1716, %v1715
        %v1742 = vpack.c.b16 %v1718, %v1717
        %v1743 = vpack.c.b16 %v1720, %v1719
        %v1744 = vpack.c.b16 %v1722, %v1721
        %v1745 = vpack.c.b16 %v1724, %v1723
        %v1746 = vpack.c.b16 %v1726, %v1725
        %v1747 = vpack.c.b16 %v1728, %v1727
        %v1748 = vpack.c.b16 %v1730, %v1729
        %v1749 = vpack.c.b16 %v1732, %v1731
        %v1750 = vpack.c.b16 %v1734, %v1733
        %1767 = vmatprep.subr.bf16.mxu0 0
        %1768 = vmatpush1.bf16.msra.mxu0 %v1735
        %1769 = vmatprep.subr.bf16.mxu0 0
        %1770 = vmatpush1.bf16.msra.mxu0 %v1736
        %1771 = vmatprep.subr.bf16.mxu0 0
        %1772 = vmatpush1.bf16.msra.mxu0 %v1737
        %1773 = vmatprep.subr.bf16.mxu0 0
        %1774 = vmatpush1.bf16.msra.mxu0 %v1738
        %1775 = vmatprep.subr.bf16.mxu0 0
        %1776 = vmatpush1.bf16.msra.mxu0 %v1739
        %1777 = vmatprep.subr.bf16.mxu0 0
        %1778 = vmatpush1.bf16.msra.mxu0 %v1740
        %1779 = vmatprep.subr.bf16.mxu0 0
        %1780 = vmatpush1.bf16.msra.mxu0 %v1741
        %1781 = vmatprep.subr.bf16.mxu0 0
        %1782 = vmatpush1.bf16.msra.mxu0 %v1742
        %1783 = vmatprep.subr.bf16.mxu0 0
        %1784 = vmatpush1.bf16.msra.mxu0 %v1743
        %1785 = vmatprep.subr.bf16.mxu0 0
        %1786 = vmatpush1.bf16.msra.mxu0 %v1744
        %1787 = vmatprep.subr.bf16.mxu0 0
        %1788 = vmatpush1.bf16.msra.mxu0 %v1745
        %1789 = vmatprep.subr.bf16.mxu0 0
        %1790 = vmatpush1.bf16.msra.mxu0 %v1746
        %1791 = vmatprep.subr.bf16.mxu0 0
        %1792 = vmatpush1.bf16.msra.mxu0 %v1747
        %1793 = vmatprep.subr.bf16.mxu0 0
        %1794 = vmatpush1.bf16.msra.mxu0 %v1748
        %1795 = vmatprep.subr.bf16.mxu0 0
        %1796 = vmatpush1.bf16.msra.mxu0 %v1749
        %1797 = vmatprep.subr.bf16.mxu0 0
        %1798 = vmatpush1.bf16.msra.mxu0 %v1750
        %1799 = vmatprep.mubr.bf16.mxu0 %v1636
        %1800 = vmatmul.mubr.bf16.gmra.mrb[0].mxu0 %v1628
        %v1801 = vpop.f32.mrb[0].mxu0
        %v1802 = vadd.f32 %v1670, %v1801
        %v1803 = vpop.f32.mrb[0].mxu0
        %v1804 = vpop.f32.mrb[0].mxu0
        %v1805 = vpop.f32.mrb[0].mxu0
        %1806 = vdwg.mxu0
        %v1807 = vmax.f32 %v1802, 0.0
        %v1808 = vpack.c.bf16 %v1807, %v1807
        %v1809 = vld [vmem:[%s11] sm:$0xf]
        %v1810 = vld [vmem:[%s11 + $0x4] sm:$0xf]
        %v1811 = vld [vmem:[%s11 + $0x8] sm:$0xf]
        %v1812 = vld [vmem:[%s11 + $0xc] sm:$0xf]
        %v1813 = vld [vmem:[%s12] sm:$0x1]
        %v1818 = vunpack.c.l.b16 %v1809
        %v1819 = vunpack.c.l.b16 %v1810
        %v1820 = vunpack.c.l.b16 %v1811
        %v1821 = vunpack.c.l.b16 %v1812
        %v1822 = vpack.c.b16 %v1819, %v1818
        %v1823 = vpack.c.b16 %v1821, %v1820
        %v1827 = vsel %vm513, %v1808, 0
        %1829 = vmatprep.subr.bf16.mxu0 0
        %1830 = vmatpush1.bf16.msra.mxu0 %v1822
        %1831 = vmatprep.subr.bf16.mxu0 0
        %1832 = vmatpush1.bf16.msra.mxu0 %v1823
        %1833 = vmatprep.subr.bf16.mxu0 0
        %1834 = vmatpush1.bf16.msra.mxu0 0
        %1835 = vmatprep.subr.bf16.mxu0 0
        %1836 = vmatpush1.bf16.msra.mxu0 0
        %1837 = vmatprep.subr.bf16.mxu0 0
        %1838 = vmatpush1.bf16.msra.mxu0 0
        %1839 = vmatprep.subr.bf16.mxu0 0
        %1840 = vmatpush1.bf16.msra.mxu0 0
        %1841 = vmatprep.subr.bf16.mxu0 0
        %1842 = vmatpush1.bf16.msra.mxu0 0
        %1843 = vmatprep.subr.bf16.mxu0 0
        %1844 = vmatpush1.bf16.msra.mxu0 0
        %1845 = vmatprep.subr.bf16.mxu0 0
        %1846 = vmatpush1.bf16.msra.mxu0 0
        %1847 = vmatprep.subr.bf16.mxu0 0
        %1848 = vmatpush1.bf16.msra.mxu0 0
        %1849 = vmatprep.subr.bf16.mxu0 0
        %1850 = vmatpush1.bf16.msra.mxu0 0
        %1851 = vmatprep.subr.bf16.mxu0 0
        %1852 = vmatpush1.bf16.msra.mxu0 0
        %1853 = vmatprep.subr.bf16.mxu0 0
        %1854 = vmatpush1.bf16.msra.mxu0 0
        %1855 = vmatprep.subr.bf16.mxu0 0
        %1856 = vmatpush1.bf16.msra.mxu0 0
        %1857 = vmatprep.subr.bf16.mxu0 0
        %1858 = vmatpush1.bf16.msra.mxu0 0
        %1859 = vmatprep.subr.bf16.mxu0 0
        %1860 = vmatpush1.bf16.msra.mxu0 0
        %1861 = vmatprep.mubr.bf16.mxu0 0
        %1862 = vmatmul.mubr.bf16.gmra.mrb[0].mxu0 %v1827
        %v1863 = vpop.f32.mrb[0].mxu0
        %v1864 = vadd.f32 %v1813, %v1863
        %v1865 = vpop.f32.mrb[0].mxu0
        %v1866 = vpop.f32.mrb[0].mxu0
        %v1867 = vpop.f32.mrb[0].mxu0
        %1868 = vdwg.mxu0
        %vm1869 = vcmask 24576
        %1870 = vst.msk [vmem:[%s454] sm:$0x1] %vm1869, %v1864
        %s1871 = sand.u32 %s323, 1
        %s1872 = scalar_lea.sflag [#allocation3], %s1871
        %s1873 = sand.u32 %s323, 1
        %s1874 = scalar_lea.vmem [#allocation2], %s1873
        // Predicated region
        $region73: #{tpu_custom_call.1} parent=71 // pred_check
          %p1875 = pneg %p333
        $region74: #{tpu_custom_call.1} parent=71 // pred_check_branch
          %1877 = sbr.rel (%p1875) target = $region76
        $region75: #{tpu_custom_call.1} parent=71 // pred_region
          %s1879 = ssub.s32 16, 16
          %1880 = vsyncadd %s1872, %s1879
          %s1881 = smul.addr %s27, 16
          %s1882 = scalar_lea.hbm %s13, %s1881
          %s1884 = sshll.u32 %s1874, 4
          %s1885 = int_to_ptr.vmem [resolvable:$true] %s1884
          %1887 = dma.vmem_to_hbm [thread:$0]  %s1885, 16, %s1882, %s1872
        $region76: #{tpu_custom_call.1} parent=71 // pred_fallthru
          _
      $region72: #{tpu_custom_call.1} parent=5 // pred_fallthru
        _
      %p1888 = scmp.le.s32.totalorder 2, %s22
      // Predicated region
      $region77: #{tpu_custom_call.1} parent=5 // pred_check
        %p1889 = pneg %p1888
      $region78: #{tpu_custom_call.1} parent=5 // pred_check_branch
        %1891 = sbr.rel (%p1889) target = $region80
      $region79: #{tpu_custom_call.1} parent=5 // pred_region
        %s1892 = ssub.s32 %s22, 2
        // Predicated region
        $region81: #{tpu_custom_call.1} parent=79 // pred_check
          %p1893 = pneg %p339
        $region82: #{tpu_custom_call.1} parent=79 // pred_check_branch
          %1895 = sbr.rel (%p1893) target = $region84
        $region83: #{tpu_custom_call.1} parent=79 // pred_region
          %s1896 = sand.u32 %s324, 1
          %s1897 = scalar_lea.sflag [#allocation3], %s1896
          %s1898 = sand.u32 %s324, 1
          %s1899 = scalar_lea.vmem [#allocation2], %s1898
          %1900 = dma.done %s1897, 16
        $region84: #{tpu_custom_call.1} parent=79 // pred_fallthru
          _
      $region80: #{tpu_custom_call.1} parent=5 // pred_fallthru
        _
    $region6: #{tpu_custom_call.1} parent=1 // loop_footer
      %s26 = sadd.s32 1, %s22
    $region7: #{tpu_custom_call.1} parent=1 // loop_footer_branch
      %21 = sbr.rel target = $region3
    $region8: #{tpu_custom_call.1} parent=1 // loop_exit
      _
    %1901 = vsyncpa [#allocation3], 1
    %s1902 = scalar_lea.sflag [#allocation3], 1
    %1903 = vsyncpa %s1902, 1

</llo_original>
